<compile_context>
chip_gen: v7x
topology: tpu7x:2x2x1
jax: 0.10.0
libtpu: 0.0.40
codegen_flags: <defaults>
</compile_context>

<pallas_src>
import functools

import jax
import jax.numpy as jnp
from jax.experimental import pallas as pl
from jax.experimental.pallas import tpu as pltpu


def _round_up(x, m):
    return ((x + m - 1) // m) * m


OUT_LANES = 128  # lane-dense output head width (multiple of 128)


# ----------------------------------------------------------------------------
# Fused kernel: [x, (W_l, b_l) * num_layers, W_out, b_out] -> sigmoid(probs)
# ----------------------------------------------------------------------------
def _fused_forward_kernel(*refs, num_layers, gp):
    """refs = (x_ref, w1, b1, ..., wL, bL, wo, bo, out_ref).

    gp = per-gate packed block width (2 * padded hidden, multiple of 128).
    Gate order inside each layer's weight: [i | g | o], each of width gp,
    each internally [fwd | bwd] so h = o*tanh(i*g) is already the
    bidirectional concat.
    """
    x_ref = refs[0]
    wo_ref = refs[-3]
    bo_ref = refs[-2]
    out_ref = refs[-1]

    h = x_ref[...]                                       # bf16 (TB, D_in)
    for layer in range(num_layers):
        w_ref = refs[1 + 2 * layer]
        b_ref = refs[2 + 2 * layer]
        gates = jnp.dot(h, w_ref[...], preferred_element_type=jnp.float32)
        gates = gates + b_ref[...]                       # f32, broadcast (1, 3*gp)
        i_g = jax.nn.sigmoid(gates[:, 0 * gp:1 * gp])    # input gate (both dirs)
        g_g = jnp.tanh(gates[:, 1 * gp:2 * gp])          # cell candidate
        o_g = jax.nn.sigmoid(gates[:, 2 * gp:3 * gp])    # output gate
        # c = f*c0 + i*g = i*g  (f-gate pruned);  h = o * tanh(c)
        # bf16 for the next MXU matmul; gate math itself stays f32.
        h = (o_g * jnp.tanh(i_g * g_g)).astype(jnp.bfloat16)

    y = jnp.dot(h, wo_ref[...], preferred_element_type=jnp.float32) + bo_ref[...]
    out_ref[...] = jax.nn.sigmoid(y).astype(out_ref.dtype)


# ----------------------------------------------------------------------------
# Parameter init (PyTorch nn.LSTM layout) + packing into kernel layout
# ----------------------------------------------------------------------------
def init_ecg_lstm_params(key, input_dim, hidden_dim, output_dim, num_layers):
    """PyTorch-style params.  W_hh is omitted (multiplied by h0 == 0)."""
    H = hidden_dim
    bound = 1.0 / jnp.sqrt(jnp.float32(H))
    layers = []
    for layer in range(num_layers):
        d_in = input_dim if layer == 0 else 2 * H
        dirs = {}
        for direction in ("fwd", "bwd"):
            key, k1, k2, k3 = jax.random.split(key, 4)
            dirs[direction] = {
                "w_ih": jax.random.uniform(k1, (4 * H, d_in), jnp.float32,
                                           -bound, bound),
                "b_ih": jax.random.uniform(k2, (4 * H,), jnp.float32,
                                           -bound, bound),
                "b_hh": jax.random.uniform(k3, (4 * H,), jnp.float32,
                                           -bound, bound),
            }
        layers.append(dirs)

    key, k1, k2 = jax.random.split(key, 3)
    fan_in = 2 * H
    lb = 1.0 / jnp.sqrt(jnp.float32(fan_in))
    out_w = jax.random.uniform(k1, (output_dim, fan_in), jnp.float32, -lb, lb)
    out_b = jax.random.uniform(k2, (output_dim,), jnp.float32, -lb, lb)
    return {"lstm": layers, "out_w": out_w, "out_b": out_b}


def pack_params(params, input_dim, hidden_dim, output_dim, num_layers):
    """Pack PyTorch params into lane-aligned, f-gate-pruned kernel weights."""
    H = hidden_dim
    HP = _round_up(H, 64)         # padded hidden per direction (2*HP % 128 == 0)
    GP = 2 * HP                   # per-gate block width (both directions)

    packed_layers = []
    for layer in range(num_layers):
        if layer == 0:
            # Layer 0 keeps K = input_dim rows (no feature padding of x).
            def place_rows(w_t):
                # (input_dim, H) -> (input_dim, HP), zero-padded columns
                return jnp.pad(w_t, ((0, 0), (0, HP - H)))
        else:
            def place_rows(w_t):
                # (2H, H): rows 0:H read h_fwd lanes, rows HP:HP+H read h_bwd
                out = jnp.zeros((GP, HP), jnp.float32)
                out = out.at[0:H, 0:H].set(w_t[0:H])
                out = out.at[HP:HP + H, 0:H].set(w_t[H:2 * H])
                return out

        gate_cols = {"i": [], "g": [], "o": []}
        bias_cols = {"i": [], "g": [], "o": []}
        for direction in ("fwd", "bwd"):
            p = params["lstm"][layer][direction]
            w_ih_t = p["w_ih"].T                   # (d_in, 4H), gate order i,f,g,o
            b = p["b_ih"] + p["b_hh"]              # (4H,)
            for name, gi in (("i", 0), ("g", 2), ("o", 3)):   # f-gate dropped
                gate_cols[name].append(place_rows(w_ih_t[:, gi * H:(gi + 1) * H]))
                bias_cols[name].append(jnp.pad(b[gi * H:(gi + 1) * H],
                                               (0, HP - H)))

        w_packed = jnp.concatenate(
            [jnp.concatenate(gate_cols[n], axis=1) for n in ("i", "g", "o")],
            axis=1).astype(jnp.bfloat16)                       # (d_in, 3*GP) bf16
        b_packed = jnp.concatenate(
            [jnp.concatenate(bias_cols[n]) for n in ("i", "g", "o")]
        ).reshape(1, 3 * GP)                                   # f32
        packed_layers.append((w_packed, b_packed))

    # Output head, lane-dense: (GP, 128) bf16; rows 0:H <- h_fwd, HP:HP+H <- h_bwd,
    # only columns 0:output_dim are non-zero.  Padded columns give sigmoid(0)=0.5,
    # sliced off in the wrapper.
    out_w_t = params["out_w"].T                                 # (2H, O)
    wo = jnp.zeros((GP, OUT_LANES), jnp.float32)
    wo = wo.at[0:H, 0:output_dim].set(out_w_t[0:H])
    wo = wo.at[HP:HP + H, 0:output_dim].set(out_w_t[H:2 * H])
    wo = wo.astype(jnp.bfloat16)
    bo = jnp.zeros((1, OUT_LANES), jnp.float32)
    bo = bo.at[0, 0:output_dim].set(params["out_b"])

    return {"layers": packed_layers, "wo": wo, "bo": bo, "HP": HP, "GP": GP}


# ----------------------------------------------------------------------------
# Forward wrapper: single pallas_call, batch-tiled parallel grid axis
# ----------------------------------------------------------------------------
def _choose_batch_tile(B):
    """Batch tile TB (multiple of 16 for bf16 sublane tiling).

    - Fat tiles amortize the ~0.35 us per-grid-step overhead.
    - For B > 16 keep >= 2 grid steps so both v7x TensorCores get work under
      dimension_semantics=("parallel",) (no effect on v5e/v6e, 1 TC).
    - Cap at 256 to bound vreg/VMEM pressure of the (TB, 3*GP) f32 gates.
    """
    if B <= 16:
        return 16
    return min(256, _round_up((B + 1) // 2, 16))


def ecg_lstm_forward(packed, x, output_dim, num_layers):
    """x: (B, input_dim) -> (B, output_dim), matching ECGLSTM.forward (eval)."""
    B, D = x.shape
    GP = packed["GP"]

    TB = _choose_batch_tile(B)
    B_pad = _round_up(B, TB)
    # bf16 cast + batch-only padding.  No feature-dim padding: the x BlockSpec
    # last dim equals the full array dim (216), which is legal as-is.
    xp = jnp.pad(x.astype(jnp.bfloat16), ((0, B_pad - B), (0, 0)))

    grid = (B_pad // TB,)

    flat_args = [xp]
    in_specs = [pl.BlockSpec((TB, D), lambda i: (i, 0))]
    for (w, b) in packed["layers"]:
        flat_args += [w, b]
        # Grid-constant index_map: weights/biases are DMA'd into VMEM once.
        in_specs += [pl.BlockSpec(w.shape, lambda i: (0, 0)),
                     pl.BlockSpec(b.shape, lambda i: (0, 0))]
    flat_args += [packed["wo"], packed["bo"]]
    in_specs += [pl.BlockSpec(packed["wo"].shape, lambda i: (0, 0)),
                 pl.BlockSpec(packed["bo"].shape, lambda i: (0, 0))]

    kernel = functools.partial(_fused_forward_kernel,
                               num_layers=num_layers, gp=GP)
    out = pl.pallas_call(
        kernel,
        out_shape=jax.ShapeDtypeStruct((B_pad, OUT_LANES), jnp.float32),
        grid=grid,
        in_specs=in_specs,
        out_specs=pl.BlockSpec((TB, OUT_LANES), lambda i: (i, 0)),
        compiler_params=pltpu.CompilerParams(
            dimension_semantics=("parallel",),
            vmem_limit_bytes=32 * 1024 * 1024),   # fits v7x's 64 MiB VMEM budget
    )(*flat_args)
    return out[:B, :output_dim]


# ----------------------------------------------------------------------------
# Pure-JAX reference (PyTorch math, full gates, f32) for a sanity check
# ----------------------------------------------------------------------------
def _reference_forward(params, x, hidden_dim, num_layers):
    H = hidden_dim
    h = x
    for layer in range(num_layers):
        outs = []
        for direction in ("fwd", "bwd"):
            p = params["lstm"][layer][direction]
            gates = h @ p["w_ih"].T + p["b_ih"] + p["b_hh"]
            i = jax.nn.sigmoid(gates[:, 0 * H:1 * H])
            f = jax.nn.sigmoid(gates[:, 1 * H:2 * H])
            g = jnp.tanh(gates[:, 2 * H:3 * H])
            o = jax.nn.sigmoid(gates[:, 3 * H:4 * H])
            c = f * 0.0 + i * g          # c0 == 0
            outs.append(o * jnp.tanh(c))
        h = jnp.concatenate(outs, axis=-1)
    return jax.nn.sigmoid(h @ params["out_w"].T + params["out_b"])


if __name__ == "__main__":
    INPUT_DIM = 216    # module default
    HIDDEN_DIM = 100   # module default (exercises H not a multiple of 64)
    OUTPUT_DIM = 1
    NUM_LAYERS = 2

    key = jax.random.PRNGKey(0)
    key, pkey = jax.random.split(key)
    params = init_ecg_lstm_params(pkey, INPUT_DIM, HIDDEN_DIM, OUTPUT_DIM,
                                  NUM_LAYERS)
    packed = pack_params(params, INPUT_DIM, HIDDEN_DIM, OUTPUT_DIM, NUM_LAYERS)

    # batch=6: single grid step, non-multiple-of-8 batch (padding path);
    # batch=40: TB=32, padded to 64, 2-step parallel grid (v7x 2-TC path).
    for batch in (6, 40):
        key, xkey = jax.random.split(key)
        x = jax.random.normal(xkey, (batch, INPUT_DIM), jnp.float32)

        out = jax.block_until_ready(
            ecg_lstm_forward(packed, x, OUTPUT_DIM, NUM_LAYERS))
        ref = _reference_forward(params, x, HIDDEN_DIM, NUM_LAYERS)

        assert out.shape == (batch, OUTPUT_DIM)
        assert jnp.allclose(out, ref, atol=2e-2), (
            f"mismatch at batch={batch}: "
            f"max|diff|={float(jnp.max(jnp.abs(out - ref)))}")

    print("KERNEL_OK")
</pallas_src>

<mosaic_0001>
module attributes {stable_mosaic.version = 11 : i64} {
  func.func @_fused_forward_kernel(%arg0: i32, %arg1: memref<16x216xbf16, #tpu.memory_space<vmem>>, %arg2: memref<216x768xbf16, #tpu.memory_space<vmem>>, %arg3: memref<1x768xf32, #tpu.memory_space<vmem>>, %arg4: memref<256x768xbf16, #tpu.memory_space<vmem>>, %arg5: memref<1x768xf32, #tpu.memory_space<vmem>>, %arg6: memref<256x128xbf16, #tpu.memory_space<vmem>>, %arg7: memref<1x128xf32, #tpu.memory_space<vmem>>, %arg8: memref<16x128xf32, #tpu.memory_space<vmem>>) attributes {dimension_semantics = [#tpu.dimension_semantics<parallel>], iteration_bounds = array<i64: 1>, scalar_prefetch = 0 : i64, scratch_operands = 0 : i64, tpu.core_type = #tpu.core_type<tc>, window_params = [{transform_indices = @transform_0, window_bounds = array<i64: 16, 216>}, {pipeline_mode = #tpu.pipeline_mode<synchronous>, transform_indices = @transform_1, window_bounds = array<i64: 216, 768>}, {pipeline_mode = #tpu.pipeline_mode<synchronous>, transform_indices = @transform_2, window_bounds = array<i64: 1, 768>}, {pipeline_mode = #tpu.pipeline_mode<synchronous>, transform_indices = @transform_3, window_bounds = array<i64: 256, 768>}, {pipeline_mode = #tpu.pipeline_mode<synchronous>, transform_indices = @transform_4, window_bounds = array<i64: 1, 768>}, {pipeline_mode = #tpu.pipeline_mode<synchronous>, transform_indices = @transform_5, window_bounds = array<i64: 256, 128>}, {pipeline_mode = #tpu.pipeline_mode<synchronous>, transform_indices = @transform_6, window_bounds = array<i64: 1, 128>}, {transform_indices = @transform_7, window_bounds = array<i64: 16, 128>}]} {
    %c0 = arith.constant 0 : index
    %c0_0 = arith.constant 0 : index
    %0 = vector.load %arg1[%c0, %c0_0] : memref<16x216xbf16, #tpu.memory_space<vmem>>, vector<16x216xbf16>
    %c0_1 = arith.constant 0 : index
    %c0_2 = arith.constant 0 : index
    %1 = vector.load %arg2[%c0_1, %c0_2] : memref<216x768xbf16, #tpu.memory_space<vmem>>, vector<216x768xbf16>
    %cst = arith.constant dense<0.000000e+00> : vector<16x768xf32>
    %2 = tpu.matmul %0, %1, %cst {dimension_numbers = #tpu.dot_dimension_numbers<[1], [0], [0], [1], [0, 0, 1, 1], [], []>} : vector<16x216xbf16>, vector<216x768xbf16>, vector<16x768xf32> -> vector<16x768xf32>
    %c0_3 = arith.constant 0 : index
    %c0_4 = arith.constant 0 : index
    %3 = vector.load %arg3[%c0_3, %c0_4] : memref<1x768xf32, #tpu.memory_space<vmem>>, vector<1x768xf32>
    %4 = vector.broadcast %3 : vector<1x768xf32> to vector<16x768xf32>
    %5 = arith.addf %2, %4 : vector<16x768xf32>
    %6 = vector.extract_strided_slice %5 {offsets = [0, 0], sizes = [16, 256], strides = [1, 1]} : vector<16x768xf32> to vector<16x256xf32>
    %7 = arith.negf %6 : vector<16x256xf32>
    %8 = math.exp %7 : vector<16x256xf32>
    %cst_5 = arith.constant 1.000000e+00 : f32
    %9 = vector.broadcast %cst_5 : f32 to vector<16x256xf32>
    %10 = arith.addf %9, %8 : vector<16x256xf32>
    %11 = arith.divf %9, %10 : vector<16x256xf32>
    %12 = vector.extract_strided_slice %5 {offsets = [0, 256], sizes = [16, 256], strides = [1, 1]} : vector<16x768xf32> to vector<16x256xf32>
    %13 = math.tanh %12 : vector<16x256xf32>
    %14 = vector.extract_strided_slice %5 {offsets = [0, 512], sizes = [16, 256], strides = [1, 1]} : vector<16x768xf32> to vector<16x256xf32>
    %15 = arith.negf %14 : vector<16x256xf32>
    %16 = math.exp %15 : vector<16x256xf32>
    %cst_6 = arith.constant 1.000000e+00 : f32
    %17 = vector.broadcast %cst_6 : f32 to vector<16x256xf32>
    %18 = arith.addf %17, %16 : vector<16x256xf32>
    %19 = arith.divf %17, %18 : vector<16x256xf32>
    %20 = arith.mulf %11, %13 : vector<16x256xf32>
    %21 = math.tanh %20 : vector<16x256xf32>
    %22 = arith.mulf %19, %21 : vector<16x256xf32>
    %23 = arith.truncf %22 : vector<16x256xf32> to vector<16x256xbf16>
    %c0_7 = arith.constant 0 : index
    %c0_8 = arith.constant 0 : index
    %24 = vector.load %arg4[%c0_7, %c0_8] : memref<256x768xbf16, #tpu.memory_space<vmem>>, vector<256x768xbf16>
    %cst_9 = arith.constant dense<0.000000e+00> : vector<16x768xf32>
    %25 = tpu.matmul %23, %24, %cst_9 {dimension_numbers = #tpu.dot_dimension_numbers<[1], [0], [0], [1], [0, 0, 1, 1], [], []>} : vector<16x256xbf16>, vector<256x768xbf16>, vector<16x768xf32> -> vector<16x768xf32>
    %c0_10 = arith.constant 0 : index
    %c0_11 = arith.constant 0 : index
    %26 = vector.load %arg5[%c0_10, %c0_11] : memref<1x768xf32, #tpu.memory_space<vmem>>, vector<1x768xf32>
    %27 = vector.broadcast %26 : vector<1x768xf32> to vector<16x768xf32>
    %28 = arith.addf %25, %27 : vector<16x768xf32>
    %29 = vector.extract_strided_slice %28 {offsets = [0, 0], sizes = [16, 256], strides = [1, 1]} : vector<16x768xf32> to vector<16x256xf32>
    %30 = arith.negf %29 : vector<16x256xf32>
    %31 = math.exp %30 : vector<16x256xf32>
    %cst_12 = arith.constant 1.000000e+00 : f32
    %32 = vector.broadcast %cst_12 : f32 to vector<16x256xf32>
    %33 = arith.addf %32, %31 : vector<16x256xf32>
    %34 = arith.divf %32, %33 : vector<16x256xf32>
    %35 = vector.extract_strided_slice %28 {offsets = [0, 256], sizes = [16, 256], strides = [1, 1]} : vector<16x768xf32> to vector<16x256xf32>
    %36 = math.tanh %35 : vector<16x256xf32>
    %37 = vector.extract_strided_slice %28 {offsets = [0, 512], sizes = [16, 256], strides = [1, 1]} : vector<16x768xf32> to vector<16x256xf32>
    %38 = arith.negf %37 : vector<16x256xf32>
    %39 = math.exp %38 : vector<16x256xf32>
    %cst_13 = arith.constant 1.000000e+00 : f32
    %40 = vector.broadcast %cst_13 : f32 to vector<16x256xf32>
    %41 = arith.addf %40, %39 : vector<16x256xf32>
    %42 = arith.divf %40, %41 : vector<16x256xf32>
    %43 = arith.mulf %34, %36 : vector<16x256xf32>
    %44 = math.tanh %43 : vector<16x256xf32>
    %45 = arith.mulf %42, %44 : vector<16x256xf32>
    %46 = arith.truncf %45 : vector<16x256xf32> to vector<16x256xbf16>
    %c0_14 = arith.constant 0 : index
    %c0_15 = arith.constant 0 : index
    %47 = vector.load %arg6[%c0_14, %c0_15] : memref<256x128xbf16, #tpu.memory_space<vmem>>, vector<256x128xbf16>
    %cst_16 = arith.constant dense<0.000000e+00> : vector<16x128xf32>
    %48 = tpu.matmul %46, %47, %cst_16 {dimension_numbers = #tpu.dot_dimension_numbers<[1], [0], [0], [1], [0, 0, 1, 1], [], []>} : vector<16x256xbf16>, vector<256x128xbf16>, vector<16x128xf32> -> vector<16x128xf32>
    %c0_17 = arith.constant 0 : index
    %c0_18 = arith.constant 0 : index
    %49 = vector.load %arg7[%c0_17, %c0_18] : memref<1x128xf32, #tpu.memory_space<vmem>>, vector<1x128xf32>
    %50 = vector.broadcast %49 : vector<1x128xf32> to vector<16x128xf32>
    %51 = arith.addf %48, %50 : vector<16x128xf32>
    %52 = arith.negf %51 : vector<16x128xf32>
    %53 = math.exp %52 : vector<16x128xf32>
    %cst_19 = arith.constant 1.000000e+00 : f32
    %54 = vector.broadcast %cst_19 : f32 to vector<16x128xf32>
    %55 = arith.addf %54, %53 : vector<16x128xf32>
    %56 = arith.divf %54, %55 : vector<16x128xf32>
    %c0_20 = arith.constant 0 : index
    %c0_21 = arith.constant 0 : index
    %57 = vector.load %arg8[%c0_20, %c0_21] : memref<16x128xf32, #tpu.memory_space<vmem>>, vector<16x128xf32>
    tpu.vector_store %arg8[%c0_20, %c0_21], %56 {strides = array<i32>} : memref<16x128xf32, #tpu.memory_space<vmem>>, vector<16x128xf32>,
    return
  }
  func.func @transform_0(%arg0: i32) -> (i32, i32) {
    %c0_i32 = arith.constant 0 : i32
    %c0_i32_0 = arith.constant 0 : i32
    return %arg0, %c0_i32 : i32, i32
  }
  func.func @transform_1(%arg0: i32) -> (i32, i32) {
    %c0_i32 = arith.constant 0 : i32
    %c0_i32_0 = arith.constant 0 : i32
    %c0_i32_1 = arith.constant 0 : i32
    return %c0_i32, %c0_i32_0 : i32, i32
  }
  func.func @transform_2(%arg0: i32) -> (i32, i32) {
    %c0_i32 = arith.constant 0 : i32
    %c0_i32_0 = arith.constant 0 : i32
    %c0_i32_1 = arith.constant 0 : i32
    return %c0_i32, %c0_i32_0 : i32, i32
  }
  func.func @transform_3(%arg0: i32) -> (i32, i32) {
    %c0_i32 = arith.constant 0 : i32
    %c0_i32_0 = arith.constant 0 : i32
    %c0_i32_1 = arith.constant 0 : i32
    return %c0_i32, %c0_i32_0 : i32, i32
  }
  func.func @transform_4(%arg0: i32) -> (i32, i32) {
    %c0_i32 = arith.constant 0 : i32
    %c0_i32_0 = arith.constant 0 : i32
    %c0_i32_1 = arith.constant 0 : i32
    return %c0_i32, %c0_i32_0 : i32, i32
  }
  func.func @transform_5(%arg0: i32) -> (i32, i32) {
    %c0_i32 = arith.constant 0 : i32
    %c0_i32_0 = arith.constant 0 : i32
    %c0_i32_1 = arith.constant 0 : i32
    return %c0_i32, %c0_i32_0 : i32, i32
  }
  func.func @transform_6(%arg0: i32) -> (i32, i32) {
    %c0_i32 = arith.constant 0 : i32
    %c0_i32_0 = arith.constant 0 : i32
    %c0_i32_1 = arith.constant 0 : i32
    return %c0_i32, %c0_i32_0 : i32, i32
  }
  func.func @transform_7(%arg0: i32) -> (i32, i32) {
    %c0_i32 = arith.constant 0 : i32
    %c0_i32_0 = arith.constant 0 : i32
    return %arg0, %c0_i32 : i32, i32
  }
}

</mosaic_0001>

<llo_original>
// kernel: tpu_custom_call.1
$region0: #{tpu_custom_call.1}
  #allocation0 [shape = 'u32[]', space=smem, size = 0x4, offset = 0x4, fixed_abs, tag = 'smem constant byte address 0x4 - core index']
  #allocation1 [shape = 'u32[144,128]{1,0:T(1,128)}', space=vmem, size = 0x12000, scoped, tag = 'internal scratch']
  %s0 = inlined_call_operand.hbm [shape: bf16[16,216], index: 0, kind: input, shape index: {}]
  %s1 = inlined_call_operand.hbm [shape: bf16[216,768], index: 1, kind: input, shape index: {}]
  %s2 = inlined_call_operand.vmem [shape: f32[1,768], index: 2, kind: input, shape index: {}]
  %s3 = inlined_call_operand.hbm [shape: bf16[256,768], index: 3, kind: input, shape index: {}]
  %s4 = inlined_call_operand.vmem [shape: f32[1,768], index: 4, kind: input, shape index: {}]
  %s5 = inlined_call_operand.hbm [shape: bf16[256,128], index: 5, kind: input, shape index: {}]
  %s6 = inlined_call_operand.vmem [shape: f32[1,128], index: 6, kind: input, shape index: {}]
  %s7 = inlined_call_operand.hbm [shape: f32[16,128], index: 7, kind: output, shape index: {}]
  %s8 = sld [smem:[#allocation0]]
  $region54: #{tpu_custom_call.1} parent=0
    _
  %s10 = ssub.s32 1, %s8
  %s11 = scalar_select 0, %s10, %s8
  $region1: #{tpu_custom_call.1} parent=0
    #allocation2 [shape = 'u8[8192]{0}', space=vmem, size = 0x2000, scoped, tag = 'input window, operand 0, single buffered']
    #allocation3 [shape = 's32[1]{0}', space=sflag, size = 0x4, scoped, tag = 'scoped memory for tpu_custom_call.1']
    #allocation4 [shape = 's32[1]{0}', space=sflag, size = 0x4, scoped, tag = 'scoped memory for tpu_custom_call.1']
    #allocation5 [shape = 'u8[331776]{0}', space=vmem, size = 0x51000, scoped, tag = 'input window, operand 1, single buffered']
    #allocation6 [shape = 's32[1]{0}', space=sflag, size = 0x4, scoped, tag = 'scoped memory for tpu_custom_call.1']
    #allocation7 [shape = 'u8[393216]{0}', space=vmem, size = 0x60000, scoped, tag = 'input window, operand 3, single buffered']
    #allocation8 [shape = 'u8[65536]{0}', space=vmem, size = 0x10000, scoped, tag = 'input window, operand 5, single buffered']
    #allocation9 [shape = 's32[1]{0}', space=sflag, size = 0x4, scoped, tag = 'scoped memory for tpu_custom_call.1']
    #allocation10 [shape = 'u8[8192]{0}', space=vmem, size = 0x2000, scoped, tag = 'output window, operand 0, single buffered']
    %12 = vsyncpa [#allocation3], 0
    %13 = vsyncpa [#allocation6], 0
    %14 = vsyncpa [#allocation9], 0
    %15 = vsyncpa [#allocation4], 0
    // Predicated region
    $region2: #{tpu_custom_call.1} parent=1 // pred_check
      _
    $region3: #{tpu_custom_call.1} parent=1 // pred_check_branch
      %17 = sbr.rel (0) target = $region5
    $region4: #{tpu_custom_call.1} parent=1 // pred_region
      %s19 = ssub.s32 256, 256
      %20 = vsyncadd [#allocation3], %s19
      %s21 = sshll.u32 [#allocation2], 4
      %s22 = int_to_ptr.vmem [resolvable:$true] %s21
      %27 = dma.hbm_to_vmem [thread:$0]  %s0, 256, %s22, [#allocation3], 128, 128, 8
    $region5: #{tpu_custom_call.1} parent=1 // pred_fallthru
      _
    // Predicated region
    $region6: #{tpu_custom_call.1} parent=1 // pred_check
      _
    $region7: #{tpu_custom_call.1} parent=1 // pred_check_branch
      %29 = sbr.rel (0) target = $region9
    $region8: #{tpu_custom_call.1} parent=1 // pred_region
      %s31 = ssub.s32 10368, 10368
      %32 = vsyncadd [#allocation6], %s31
      %s33 = sshll.u32 [#allocation5], 4
      %s34 = int_to_ptr.vmem [resolvable:$true] %s33
      %39 = dma.hbm_to_vmem [thread:$0]  %s1, 10368, %s34, [#allocation6], 384, 384, 24
    $region9: #{tpu_custom_call.1} parent=1 // pred_fallthru
      _
    // Predicated region
    $region10: #{tpu_custom_call.1} parent=1 // pred_check
      _
    $region11: #{tpu_custom_call.1} parent=1 // pred_check_branch
      %41 = sbr.rel (0) target = $region13
    $region12: #{tpu_custom_call.1} parent=1 // pred_region
      _
    $region13: #{tpu_custom_call.1} parent=1 // pred_fallthru
      _
    // Predicated region
    $region14: #{tpu_custom_call.1} parent=1 // pred_check
      _
    $region15: #{tpu_custom_call.1} parent=1 // pred_check_branch
      %43 = sbr.rel (0) target = $region17
    $region16: #{tpu_custom_call.1} parent=1 // pred_region
      %s45 = ssub.s32 12288, 12288
      %46 = vsyncadd [#allocation6], %s45
      %s47 = sshll.u32 [#allocation7], 4
      %s48 = int_to_ptr.vmem [resolvable:$true] %s47
      %53 = dma.hbm_to_vmem [thread:$0]  %s3, 12288, %s48, [#allocation6], 384, 384, 24
    $region17: #{tpu_custom_call.1} parent=1 // pred_fallthru
      _
    // Predicated region
    $region18: #{tpu_custom_call.1} parent=1 // pred_check
      _
    $region19: #{tpu_custom_call.1} parent=1 // pred_check_branch
      %55 = sbr.rel (0) target = $region21
    $region20: #{tpu_custom_call.1} parent=1 // pred_region
      _
    $region21: #{tpu_custom_call.1} parent=1 // pred_fallthru
      _
    // Predicated region
    $region22: #{tpu_custom_call.1} parent=1 // pred_check
      _
    $region23: #{tpu_custom_call.1} parent=1 // pred_check_branch
      %57 = sbr.rel (0) target = $region25
    $region24: #{tpu_custom_call.1} parent=1 // pred_region
      %s59 = ssub.s32 2048, 2048
      %60 = vsyncadd [#allocation9], %s59
      %s61 = sshll.u32 [#allocation8], 4
      %s62 = int_to_ptr.vmem [resolvable:$true] %s61
      %67 = dma.hbm_to_vmem [thread:$0]  %s5, 2048, %s62, [#allocation9], 64, 64, 4
    $region25: #{tpu_custom_call.1} parent=1 // pred_fallthru
      _
    // Predicated region
    $region26: #{tpu_custom_call.1} parent=1 // pred_check
      _
    $region27: #{tpu_custom_call.1} parent=1 // pred_check_branch
      %69 = sbr.rel (0) target = $region29
    $region28: #{tpu_custom_call.1} parent=1 // pred_region
      _
    $region29: #{tpu_custom_call.1} parent=1 // pred_fallthru
      _
    // Predicated region
    $region30: #{tpu_custom_call.1} parent=1 // pred_check
      _
    $region31: #{tpu_custom_call.1} parent=1 // pred_check_branch
      %71 = sbr.rel (0) target = $region33
    $region32: #{tpu_custom_call.1} parent=1 // pred_region
      %72 = dma.done [#allocation3], 256
    $region33: #{tpu_custom_call.1} parent=1 // pred_fallthru
      _
    // Predicated region
    $region34: #{tpu_custom_call.1} parent=1 // pred_check
      _
    $region35: #{tpu_custom_call.1} parent=1 // pred_check_branch
      %74 = sbr.rel (0) target = $region37
    $region36: #{tpu_custom_call.1} parent=1 // pred_region
      %75 = dma.done [#allocation6], 10368
    $region37: #{tpu_custom_call.1} parent=1 // pred_fallthru
      _
    // Predicated region
    $region38: #{tpu_custom_call.1} parent=1 // pred_check
      _
    $region39: #{tpu_custom_call.1} parent=1 // pred_check_branch
      %77 = sbr.rel (0) target = $region41
    $region40: #{tpu_custom_call.1} parent=1 // pred_region
      %78 = dma.done [#allocation6], 12288
    $region41: #{tpu_custom_call.1} parent=1 // pred_fallthru
      _
    // Predicated region
    $region42: #{tpu_custom_call.1} parent=1 // pred_check
      _
    $region43: #{tpu_custom_call.1} parent=1 // pred_check_branch
      %80 = sbr.rel (0) target = $region45
    $region44: #{tpu_custom_call.1} parent=1 // pred_region
      %81 = dma.done [#allocation9], 2048
    $region45: #{tpu_custom_call.1} parent=1 // pred_fallthru
      _
    %v83 = vld [vmem:[#allocation2] sm:$0xff]
    %v84 = vld [vmem:[#allocation2 + $0x8] sm:$0xff]
    %v85 = vld [vmem:[#allocation5] sm:$0xff]
    %v86 = vld [vmem:[#allocation5 + $0x8] sm:$0xff]
    %v87 = vld [vmem:[#allocation5 + $0x10] sm:$0xff]
    %v88 = vld [vmem:[#allocation5 + $0x18] sm:$0xff]
    %v89 = vld [vmem:[#allocation5 + $0x20] sm:$0xff]
    %v90 = vld [vmem:[#allocation5 + $0x28] sm:$0xff]
    %v91 = vld [vmem:[#allocation5 + $0x30] sm:$0xff]
    %v92 = vld [vmem:[#allocation5 + $0x38] sm:$0xff]
    %v93 = vld [vmem:[#allocation5 + $0x40] sm:$0xff]
    %v94 = vld [vmem:[#allocation5 + $0x48] sm:$0xff]
    %v95 = vld [vmem:[#allocation5 + $0x50] sm:$0xff]
    %v96 = vld [vmem:[#allocation5 + $0x58] sm:$0xff]
    %v97 = vld [vmem:[#allocation5 + $0x60] sm:$0xff]
    %v98 = vld [vmem:[#allocation5 + $0x68] sm:$0xff]
    %v99 = vld [vmem:[#allocation5 + $0x70] sm:$0xff]
    %v100 = vld [vmem:[#allocation5 + $0x78] sm:$0xff]
    %v101 = vld [vmem:[#allocation5 + $0x80] sm:$0xff]
    %v102 = vld [vmem:[#allocation5 + $0x88] sm:$0xff]
    %v103 = vld [vmem:[#allocation5 + $0x90] sm:$0xff]
    %v104 = vld [vmem:[#allocation5 + $0x98] sm:$0xff]
    %v105 = vld [vmem:[#allocation5 + $0xa0] sm:$0xff]
    %v106 = vld [vmem:[#allocation5 + $0xa8] sm:$0xff]
    %v107 = vld [vmem:[#allocation5 + $0xb0] sm:$0xff]
    %v108 = vld [vmem:[#allocation5 + $0xb8] sm:$0xff]
    %v109 = vld [vmem:[#allocation5 + $0xc0] sm:$0xff]
    %v110 = vld [vmem:[#allocation5 + $0xc8] sm:$0xff]
    %v111 = vld [vmem:[#allocation5 + $0xd0] sm:$0xff]
    %v112 = vld [vmem:[#allocation5 + $0xd8] sm:$0xff]
    %v113 = vld [vmem:[#allocation5 + $0xe0] sm:$0xff]
    %v114 = vld [vmem:[#allocation5 + $0xe8] sm:$0xff]
    %v115 = vld [vmem:[#allocation5 + $0xf0] sm:$0xff]
    %v116 = vld [vmem:[#allocation5 + $0xf8] sm:$0xff]
    %v117 = vld [vmem:[#allocation5 + $0x100] sm:$0xff]
    %v118 = vld [vmem:[#allocation5 + $0x108] sm:$0xff]
    %v119 = vld [vmem:[#allocation5 + $0x110] sm:$0xff]
    %v120 = vld [vmem:[#allocation5 + $0x118] sm:$0xff]
    %v121 = vld [vmem:[#allocation5 + $0x120] sm:$0xff]
    %v122 = vld [vmem:[#allocation5 + $0x128] sm:$0xff]
    %v123 = vld [vmem:[#allocation5 + $0x130] sm:$0xff]
    %v124 = vld [vmem:[#allocation5 + $0x138] sm:$0xff]
    %v125 = vld [vmem:[#allocation5 + $0x140] sm:$0xff]
    %v126 = vld [vmem:[#allocation5 + $0x148] sm:$0xff]
    %v127 = vld [vmem:[#allocation5 + $0x150] sm:$0xff]
    %v128 = vld [vmem:[#allocation5 + $0x158] sm:$0xff]
    %v129 = vld [vmem:[#allocation5 + $0x160] sm:$0xff]
    %v130 = vld [vmem:[#allocation5 + $0x168] sm:$0xff]
    %v131 = vld [vmem:[#allocation5 + $0x170] sm:$0xff]
    %v132 = vld [vmem:[#allocation5 + $0x178] sm:$0xff]
    %v133 = vld [vmem:[#allocation5 + $0x180] sm:$0xff]
    %v134 = vld [vmem:[#allocation5 + $0x188] sm:$0xff]
    %v135 = vld [vmem:[#allocation5 + $0x190] sm:$0xff]
    %v136 = vld [vmem:[#allocation5 + $0x198] sm:$0xff]
    %v137 = vld [vmem:[#allocation5 + $0x1a0] sm:$0xff]
    %v138 = vld [vmem:[#allocation5 + $0x1a8] sm:$0xff]
    %v139 = vld [vmem:[#allocation5 + $0x1b0] sm:$0xff]
    %v140 = vld [vmem:[#allocation5 + $0x1b8] sm:$0xff]
    %v141 = vld [vmem:[#allocation5 + $0x1c0] sm:$0xff]
    %v142 = vld [vmem:[#allocation5 + $0x1c8] sm:$0xff]
    %v143 = vld [vmem:[#allocation5 + $0x1d0] sm:$0xff]
    %v144 = vld [vmem:[#allocation5 + $0x1d8] sm:$0xff]
    %v145 = vld [vmem:[#allocation5 + $0x1e0] sm:$0xff]
    %v146 = vld [vmem:[#allocation5 + $0x1e8] sm:$0xff]
    %v147 = vld [vmem:[#allocation5 + $0x1f0] sm:$0xff]
    %v148 = vld [vmem:[#allocation5 + $0x1f8] sm:$0xff]
    %v149 = vld [vmem:[#allocation5 + $0x200] sm:$0xff]
    %v150 = vld [vmem:[#allocation5 + $0x208] sm:$0xff]
    %v151 = vld [vmem:[#allocation5 + $0x210] sm:$0xff]
    %v152 = vld [vmem:[#allocation5 + $0x218] sm:$0xff]
    %v153 = vld [vmem:[#allocation5 + $0x220] sm:$0xff]
    %v154 = vld [vmem:[#allocation5 + $0x228] sm:$0xff]
    %v155 = vld [vmem:[#allocation5 + $0x230] sm:$0xff]
    %v156 = vld [vmem:[#allocation5 + $0x238] sm:$0xff]
    %v157 = vld [vmem:[#allocation5 + $0x240] sm:$0xff]
    %v158 = vld [vmem:[#allocation5 + $0x248] sm:$0xff]
    %v159 = vld [vmem:[#allocation5 + $0x250] sm:$0xff]
    %v160 = vld [vmem:[#allocation5 + $0x258] sm:$0xff]
    %v161 = vld [vmem:[#allocation5 + $0x260] sm:$0xff]
    %v162 = vld [vmem:[#allocation5 + $0x268] sm:$0xff]
    %v163 = vld [vmem:[#allocation5 + $0x270] sm:$0xff]
    %v164 = vld [vmem:[#allocation5 + $0x278] sm:$0xff]
    %v165 = vld [vmem:[#allocation5 + $0x280] sm:$0xff]
    %v166 = vld [vmem:[%s2] sm:$0x3f]
    %v168 = vlaneseq
    %v169 = vshrl.u32 %v168, 7
    %v170 = vsub.s32 0, %v169
    %v171 = vrot.slane %v166, %v170
    %v172 = vlaneseq
    %v173 = vshrl.u32 %v172, 7
    %v174 = vsub.s32 1, %v173
    %v175 = vrot.slane %v166, %v174
    %v176 = vlaneseq
    %v177 = vshrl.u32 %v176, 7
    %v178 = vsub.s32 2, %v177
    %v179 = vrot.slane %v166, %v178
    %v180 = vlaneseq
    %v181 = vshrl.u32 %v180, 7
    %v182 = vsub.s32 3, %v181
    %v183 = vrot.slane %v166, %v182
    %v184 = vlaneseq
    %v185 = vshrl.u32 %v184, 7
    %v186 = vsub.s32 4, %v185
    %v187 = vrot.slane %v166, %v186
    %v188 = vlaneseq
    %v189 = vshrl.u32 %v188, 7
    %v190 = vsub.s32 5, %v189
    %v191 = vrot.slane %v166, %v190
    %v200 = vunpack.c.l.b16 %v83
    %v201 = vunpack.c.h.b16 %v83
    %v202 = vunpack.c.l.b16 %v84
    %v203 = vunpack.c.h.b16 %v84
    %v204 = vpack.c.b16 %v202, %v200
    %v205 = vpack.c.b16 %v203, %v201
    %v288 = vunpack.c.l.b16 %v85
    %v289 = vunpack.c.h.b16 %v85
    %v290 = vunpack.c.l.b16 %v86
    %v291 = vunpack.c.h.b16 %v86
    %v292 = vunpack.c.l.b16 %v87
    %v293 = vunpack.c.h.b16 %v87
    %v294 = vunpack.c.l.b16 %v88
    %v295 = vunpack.c.h.b16 %v88
    %v296 = vunpack.c.l.b16 %v89
    %v297 = vunpack.c.h.b16 %v89
    %v298 = vunpack.c.l.b16 %v90
    %v299 = vunpack.c.h.b16 %v90
    %v300 = vunpack.c.l.b16 %v91
    %v301 = vunpack.c.h.b16 %v91
    %v302 = vunpack.c.l.b16 %v92
    %v303 = vunpack.c.h.b16 %v92
    %v304 = vunpack.c.l.b16 %v93
    %v305 = vunpack.c.h.b16 %v93
    %v306 = vunpack.c.l.b16 %v94
    %v307 = vunpack.c.h.b16 %v94
    %v308 = vunpack.c.l.b16 %v95
    %v309 = vunpack.c.h.b16 %v95
    %v310 = vunpack.c.l.b16 %v96
    %v311 = vunpack.c.h.b16 %v96
    %v312 = vunpack.c.l.b16 %v97
    %v313 = vunpack.c.h.b16 %v97
    %v314 = vunpack.c.l.b16 %v98
    %v315 = vunpack.c.h.b16 %v98
    %v316 = vunpack.c.l.b16 %v99
    %v317 = vunpack.c.h.b16 %v99
    %v318 = vunpack.c.l.b16 %v100
    %v319 = vunpack.c.h.b16 %v100
    %v320 = vunpack.c.l.b16 %v101
    %v321 = vunpack.c.h.b16 %v101
    %v322 = vunpack.c.l.b16 %v102
    %v323 = vunpack.c.h.b16 %v102
    %v324 = vunpack.c.l.b16 %v103
    %v325 = vunpack.c.h.b16 %v103
    %v326 = vunpack.c.l.b16 %v104
    %v327 = vunpack.c.h.b16 %v104
    %v328 = vunpack.c.l.b16 %v105
    %v329 = vunpack.c.h.b16 %v105
    %v330 = vunpack.c.l.b16 %v106
    %v331 = vunpack.c.h.b16 %v106
    %v332 = vunpack.c.l.b16 %v107
    %v333 = vunpack.c.h.b16 %v107
    %v334 = vunpack.c.l.b16 %v108
    %v335 = vunpack.c.h.b16 %v108
    %v336 = vunpack.c.l.b16 %v109
    %v337 = vunpack.c.h.b16 %v109
    %v338 = vunpack.c.l.b16 %v110
    %v339 = vunpack.c.h.b16 %v110
    %v340 = vunpack.c.l.b16 %v111
    %v341 = vunpack.c.h.b16 %v111
    %v342 = vunpack.c.l.b16 %v112
    %v343 = vunpack.c.h.b16 %v112
    %v344 = vunpack.c.l.b16 %v113
    %v345 = vunpack.c.h.b16 %v113
    %v346 = vunpack.c.l.b16 %v114
    %v347 = vunpack.c.h.b16 %v114
    %v348 = vunpack.c.l.b16 %v115
    %v349 = vunpack.c.h.b16 %v115
    %v350 = vunpack.c.l.b16 %v116
    %v351 = vunpack.c.h.b16 %v116
    %v352 = vunpack.c.l.b16 %v117
    %v353 = vunpack.c.h.b16 %v117
    %v354 = vunpack.c.l.b16 %v118
    %v355 = vunpack.c.h.b16 %v118
    %v356 = vunpack.c.l.b16 %v119
    %v357 = vunpack.c.h.b16 %v119
    %v358 = vunpack.c.l.b16 %v120
    %v359 = vunpack.c.h.b16 %v120
    %v360 = vunpack.c.l.b16 %v121
    %v361 = vunpack.c.h.b16 %v121
    %v362 = vunpack.c.l.b16 %v122
    %v363 = vunpack.c.h.b16 %v122
    %v364 = vunpack.c.l.b16 %v123
    %v365 = vunpack.c.h.b16 %v123
    %v366 = vunpack.c.l.b16 %v124
    %v367 = vunpack.c.h.b16 %v124
    %v368 = vunpack.c.l.b16 %v125
    %v369 = vunpack.c.h.b16 %v125
    %v370 = vunpack.c.l.b16 %v126
    %v371 = vunpack.c.h.b16 %v126
    %v372 = vunpack.c.l.b16 %v127
    %v373 = vunpack.c.h.b16 %v127
    %v374 = vunpack.c.l.b16 %v128
    %v375 = vunpack.c.h.b16 %v128
    %v376 = vunpack.c.l.b16 %v129
    %v377 = vunpack.c.h.b16 %v129
    %v378 = vunpack.c.l.b16 %v130
    %v379 = vunpack.c.h.b16 %v130
    %v380 = vunpack.c.l.b16 %v131
    %v381 = vunpack.c.h.b16 %v131
    %v382 = vunpack.c.l.b16 %v132
    %v383 = vunpack.c.h.b16 %v132
    %v384 = vunpack.c.l.b16 %v133
    %v385 = vunpack.c.h.b16 %v133
    %v386 = vunpack.c.l.b16 %v134
    %v387 = vunpack.c.h.b16 %v134
    %v388 = vunpack.c.l.b16 %v135
    %v389 = vunpack.c.h.b16 %v135
    %v390 = vunpack.c.l.b16 %v136
    %v391 = vunpack.c.h.b16 %v136
    %v392 = vunpack.c.l.b16 %v137
    %v393 = vunpack.c.h.b16 %v137
    %v394 = vunpack.c.l.b16 %v138
    %v395 = vunpack.c.h.b16 %v138
    %v396 = vunpack.c.l.b16 %v139
    %v397 = vunpack.c.h.b16 %v139
    %v398 = vunpack.c.l.b16 %v140
    %v399 = vunpack.c.h.b16 %v140
    %v400 = vunpack.c.l.b16 %v141
    %v401 = vunpack.c.h.b16 %v141
    %v402 = vunpack.c.l.b16 %v142
    %v403 = vunpack.c.h.b16 %v142
    %v404 = vunpack.c.l.b16 %v143
    %v405 = vunpack.c.h.b16 %v143
    %v406 = vunpack.c.l.b16 %v144
    %v407 = vunpack.c.h.b16 %v144
    %v408 = vunpack.c.l.b16 %v145
    %v409 = vunpack.c.h.b16 %v145
    %v410 = vunpack.c.l.b16 %v146
    %v411 = vunpack.c.h.b16 %v146
    %v412 = vunpack.c.l.b16 %v147
    %v413 = vunpack.c.h.b16 %v147
    %v414 = vunpack.c.l.b16 %v148
    %v415 = vunpack.c.h.b16 %v148
    %v416 = vunpack.c.l.b16 %v149
    %v417 = vunpack.c.h.b16 %v149
    %v418 = vunpack.c.l.b16 %v150
    %v419 = vunpack.c.h.b16 %v150
    %v420 = vunpack.c.l.b16 %v151
    %v421 = vunpack.c.h.b16 %v151
    %v422 = vunpack.c.l.b16 %v152
    %v423 = vunpack.c.h.b16 %v152
    %v424 = vunpack.c.l.b16 %v153
    %v425 = vunpack.c.h.b16 %v153
    %v426 = vunpack.c.l.b16 %v154
    %v427 = vunpack.c.h.b16 %v154
    %v428 = vunpack.c.l.b16 %v155
    %v429 = vunpack.c.h.b16 %v155
    %v430 = vunpack.c.l.b16 %v156
    %v431 = vunpack.c.h.b16 %v156
    %v432 = vunpack.c.l.b16 %v157
    %v433 = vunpack.c.h.b16 %v157
    %v434 = vunpack.c.l.b16 %v158
    %v435 = vunpack.c.h.b16 %v158
    %v436 = vunpack.c.l.b16 %v159
    %v437 = vunpack.c.h.b16 %v159
    %v438 = vunpack.c.l.b16 %v160
    %v439 = vunpack.c.h.b16 %v160
    %v440 = vunpack.c.l.b16 %v161
    %v441 = vunpack.c.h.b16 %v161
    %v442 = vunpack.c.l.b16 %v162
    %v443 = vunpack.c.h.b16 %v162
    %v444 = vunpack.c.l.b16 %v163
    %v445 = vunpack.c.h.b16 %v163
    %v446 = vunpack.c.l.b16 %v164
    %v447 = vunpack.c.h.b16 %v164
    %v448 = vunpack.c.l.b16 %v165
    %v449 = vunpack.c.h.b16 %v165
    %v450 = vpack.c.b16 %v294, %v288
    %v451 = vpack.c.b16 %v295, %v289
    %v452 = vpack.c.b16 %v296, %v290
    %v453 = vpack.c.b16 %v297, %v291
    %v454 = vpack.c.b16 %v298, %v292
    %v455 = vpack.c.b16 %v299, %v293
    %v456 = vpack.c.b16 %v306, %v300
    %v457 = vpack.c.b16 %v307, %v301
    %v458 = vpack.c.b16 %v308, %v302
    %v459 = vpack.c.b16 %v309, %v303
    %v460 = vpack.c.b16 %v310, %v304
    %v461 = vpack.c.b16 %v311, %v305
    %v462 = vpack.c.b16 %v318, %v312
    %v463 = vpack.c.b16 %v319, %v313
    %v464 = vpack.c.b16 %v320, %v314
    %v465 = vpack.c.b16 %v321, %v315
    %v466 = vpack.c.b16 %v322, %v316
    %v467 = vpack.c.b16 %v323, %v317
    %v468 = vpack.c.b16 %v330, %v324
    %v469 = vpack.c.b16 %v331, %v325
    %v470 = vpack.c.b16 %v332, %v326
    %v471 = vpack.c.b16 %v333, %v327
    %v472 = vpack.c.b16 %v334, %v328
    %v473 = vpack.c.b16 %v335, %v329
    %v474 = vpack.c.b16 %v342, %v336
    %v475 = vpack.c.b16 %v343, %v337
    %v476 = vpack.c.b16 %v344, %v338
    %v477 = vpack.c.b16 %v345, %v339
    %v478 = vpack.c.b16 %v346, %v340
    %v479 = vpack.c.b16 %v347, %v341
    %v480 = vpack.c.b16 %v354, %v348
    %v481 = vpack.c.b16 %v355, %v349
    %v482 = vpack.c.b16 %v356, %v350
    %v483 = vpack.c.b16 %v357, %v351
    %v484 = vpack.c.b16 %v358, %v352
    %v485 = vpack.c.b16 %v359, %v353
    %v486 = vpack.c.b16 %v366, %v360
    %v487 = vpack.c.b16 %v367, %v361
    %v488 = vpack.c.b16 %v368, %v362
    %v489 = vpack.c.b16 %v369, %v363
    %v490 = vpack.c.b16 %v370, %v364
    %v491 = vpack.c.b16 %v371, %v365
    %v492 = vpack.c.b16 %v378, %v372
    %v493 = vpack.c.b16 %v379, %v373
    %v494 = vpack.c.b16 %v380, %v374
    %v495 = vpack.c.b16 %v381, %v375
    %v496 = vpack.c.b16 %v382, %v376
    %v497 = vpack.c.b16 %v383, %v377
    %v498 = vpack.c.b16 %v390, %v384
    %v499 = vpack.c.b16 %v391, %v385
    %v500 = vpack.c.b16 %v392, %v386
    %v501 = vpack.c.b16 %v393, %v387
    %v502 = vpack.c.b16 %v394, %v388
    %v503 = vpack.c.b16 %v395, %v389
    %v504 = vpack.c.b16 %v402, %v396
    %v505 = vpack.c.b16 %v403, %v397
    %v506 = vpack.c.b16 %v404, %v398
    %v507 = vpack.c.b16 %v405, %v399
    %v508 = vpack.c.b16 %v406, %v400
    %v509 = vpack.c.b16 %v407, %v401
    %v510 = vpack.c.b16 %v414, %v408
    %v511 = vpack.c.b16 %v415, %v409
    %v512 = vpack.c.b16 %v416, %v410
    %v513 = vpack.c.b16 %v417, %v411
    %v514 = vpack.c.b16 %v418, %v412
    %v515 = vpack.c.b16 %v419, %v413
    %v516 = vpack.c.b16 %v426, %v420
    %v517 = vpack.c.b16 %v427, %v421
    %v518 = vpack.c.b16 %v428, %v422
    %v519 = vpack.c.b16 %v429, %v423
    %v520 = vpack.c.b16 %v430, %v424
    %v521 = vpack.c.b16 %v431, %v425
    %v522 = vpack.c.b16 %v438, %v432
    %v523 = vpack.c.b16 %v439, %v433
    %v524 = vpack.c.b16 %v440, %v434
    %v525 = vpack.c.b16 %v441, %v435
    %v526 = vpack.c.b16 %v442, %v436
    %v527 = vpack.c.b16 %v443, %v437
    %v528 = vpack.c.b16 %v444, %v444
    %v529 = vpack.c.b16 %v445, %v445
    %v530 = vpack.c.b16 %v446, %v446
    %v531 = vpack.c.b16 %v447, %v447
    %v532 = vpack.c.b16 %v448, %v448
    %v533 = vpack.c.b16 %v449, %v449
    %vm612 = vcmask 719872
    %v614 = vsel %vm612, %v205, 0
    %vm616 = vcmask 1043456
    %v618 = vsel %vm616, %v528, 0
    %v621 = vsel %vm616, %v529, 0
    %v624 = vsel %vm616, %v530, 0
    %v627 = vsel %vm616, %v531, 0
    %v630 = vsel %vm616, %v532, 0
    %v633 = vsel %vm616, %v533, 0
    %635 = vmatprep.subr.bf16.mxu0 %v451
    %636 = vmatpush1.bf16.msra.mxu0 %v450
    %637 = vmatprep.subr.bf16.mxu0 %v457
    %638 = vmatpush1.bf16.msra.mxu0 %v456
    %639 = vmatprep.subr.bf16.mxu0 %v463
    %640 = vmatpush1.bf16.msra.mxu0 %v462
    %641 = vmatprep.subr.bf16.mxu0 %v469
    %642 = vmatpush1.bf16.msra.mxu0 %v468
    %643 = vmatprep.subr.bf16.mxu0 %v475
    %644 = vmatpush1.bf16.msra.mxu0 %v474
    %645 = vmatprep.subr.bf16.mxu0 %v481
    %646 = vmatpush1.bf16.msra.mxu0 %v480
    %647 = vmatprep.subr.bf16.mxu0 %v487
    %648 = vmatpush1.bf16.msra.mxu0 %v486
    %649 = vmatprep.subr.bf16.mxu0 %v493
    %650 = vmatpush1.bf16.msra.mxu0 %v492
    %651 = vmatprep.subr.bf16.mxu0 %v499
    %652 = vmatpush1.bf16.msra.mxu0 %v498
    %653 = vmatprep.subr.bf16.mxu0 %v505
    %654 = vmatpush1.bf16.msra.mxu0 %v504
    %655 = vmatprep.subr.bf16.mxu0 %v511
    %656 = vmatpush1.bf16.msra.mxu0 %v510
    %657 = vmatprep.subr.bf16.mxu0 %v517
    %658 = vmatpush1.bf16.msra.mxu0 %v516
    %659 = vmatprep.subr.bf16.mxu0 %v523
    %660 = vmatpush1.bf16.msra.mxu0 %v522
    %661 = vmatprep.subr.bf16.mxu0 %v621
    %662 = vmatpush1.bf16.msra.mxu0 %v618
    %663 = vmatprep.subr.bf16.mxu0 0
    %664 = vmatpush1.bf16.msra.mxu0 0
    %665 = vmatprep.subr.bf16.mxu0 0
    %666 = vmatpush1.bf16.msra.mxu0 0
    %667 = vmatprep.mubr.bf16.mxu0 %v614
    %668 = vmatmul.mubr.bf16.gmra.mrb[0].mxu0 %v204
    %v669 = vpop.f32.mrb[0].mxu0
    %v670 = vadd.f32 %v171, %v669
    %v671 = vpop.f32.mrb[0].mxu0
    %v672 = vadd.f32 %v175, %v671
    %v673 = vpop.f32.mrb[0].mxu0
    %v674 = vadd.f32 %v171, %v673
    %v675 = vpop.f32.mrb[0].mxu0
    %v676 = vadd.f32 %v175, %v675
    %677 = vdwg.mxu0
    %678 = vmatprep.subr.bf16.mxu0 %v453
    %679 = vmatpush1.bf16.msra.mxu0 %v452
    %680 = vmatprep.subr.bf16.mxu0 %v459
    %681 = vmatpush1.bf16.msra.mxu0 %v458
    %682 = vmatprep.subr.bf16.mxu0 %v465
    %683 = vmatpush1.bf16.msra.mxu0 %v464
    %684 = vmatprep.subr.bf16.mxu0 %v471
    %685 = vmatpush1.bf16.msra.mxu0 %v470
    %686 = vmatprep.subr.bf16.mxu0 %v477
    %687 = vmatpush1.bf16.msra.mxu0 %v476
    %688 = vmatprep.subr.bf16.mxu0 %v483
    %689 = vmatpush1.bf16.msra.mxu0 %v482
    %690 = vmatprep.subr.bf16.mxu0 %v489
    %691 = vmatpush1.bf16.msra.mxu0 %v488
    %692 = vmatprep.subr.bf16.mxu0 %v495
    %693 = vmatpush1.bf16.msra.mxu0 %v494
    %694 = vmatprep.subr.bf16.mxu0 %v501
    %695 = vmatpush1.bf16.msra.mxu0 %v500
    %696 = vmatprep.subr.bf16.mxu0 %v507
    %697 = vmatpush1.bf16.msra.mxu0 %v506
    %698 = vmatprep.subr.bf16.mxu0 %v513
    %699 = vmatpush1.bf16.msra.mxu0 %v512
    %700 = vmatprep.subr.bf16.mxu0 %v519
    %701 = vmatpush1.bf16.msra.mxu0 %v518
    %702 = vmatprep.subr.bf16.mxu0 %v525
    %703 = vmatpush1.bf16.msra.mxu0 %v524
    %704 = vmatprep.subr.bf16.mxu0 %v627
    %705 = vmatpush1.bf16.msra.mxu0 %v624
    %706 = vmatprep.subr.bf16.mxu0 0
    %707 = vmatpush1.bf16.msra.mxu0 0
    %708 = vmatprep.subr.bf16.mxu0 0
    %709 = vmatpush1.bf16.msra.mxu0 0
    %710 = vmatprep.mubr.bf16.mxu0 %v614
    %711 = vmatmul.mubr.bf16.gmra.mrb[0].mxu0 %v204
    %v712 = vpop.f32.mrb[0].mxu0
    %v713 = vadd.f32 %v179, %v712
    %v714 = vpop.f32.mrb[0].mxu0
    %v715 = vadd.f32 %v183, %v714
    %v716 = vpop.f32.mrb[0].mxu0
    %v717 = vadd.f32 %v179, %v716
    %v718 = vpop.f32.mrb[0].mxu0
    %v719 = vadd.f32 %v183, %v718
    %720 = vdwg.mxu0
    %721 = vmatprep.subr.bf16.mxu0 %v455
    %722 = vmatpush1.bf16.msra.mxu0 %v454
    %723 = vmatprep.subr.bf16.mxu0 %v461
    %724 = vmatpush1.bf16.msra.mxu0 %v460
    %725 = vmatprep.subr.bf16.mxu0 %v467
    %726 = vmatpush1.bf16.msra.mxu0 %v466
    %727 = vmatprep.subr.bf16.mxu0 %v473
    %728 = vmatpush1.bf16.msra.mxu0 %v472
    %729 = vmatprep.subr.bf16.mxu0 %v479
    %730 = vmatpush1.bf16.msra.mxu0 %v478
    %731 = vmatprep.subr.bf16.mxu0 %v485
    %732 = vmatpush1.bf16.msra.mxu0 %v484
    %733 = vmatprep.subr.bf16.mxu0 %v491
    %734 = vmatpush1.bf16.msra.mxu0 %v490
    %735 = vmatprep.subr.bf16.mxu0 %v497
    %736 = vmatpush1.bf16.msra.mxu0 %v496
    %737 = vmatprep.subr.bf16.mxu0 %v503
    %738 = vmatpush1.bf16.msra.mxu0 %v502
    %739 = vmatprep.subr.bf16.mxu0 %v509
    %740 = vmatpush1.bf16.msra.mxu0 %v508
    %741 = vmatprep.subr.bf16.mxu0 %v515
    %742 = vmatpush1.bf16.msra.mxu0 %v514
    %743 = vmatprep.subr.bf16.mxu0 %v521
    %744 = vmatpush1.bf16.msra.mxu0 %v520
    %745 = vmatprep.subr.bf16.mxu0 %v527
    %746 = vmatpush1.bf16.msra.mxu0 %v526
    %747 = vmatprep.subr.bf16.mxu0 %v633
    %748 = vmatpush1.bf16.msra.mxu0 %v630
    %749 = vmatprep.subr.bf16.mxu0 0
    %750 = vmatpush1.bf16.msra.mxu0 0
    %751 = vmatprep.subr.bf16.mxu0 0
    %752 = vmatpush1.bf16.msra.mxu0 0
    %753 = vmatprep.mubr.bf16.mxu0 %v614
    %754 = vmatmul.mubr.bf16.gmra.mrb[0].mxu0 %v204
    %v755 = vpop.f32.mrb[0].mxu0
    %v756 = vadd.f32 %v187, %v755
    %v757 = vpop.f32.mrb[0].mxu0
    %v758 = vadd.f32 %v191, %v757
    %v759 = vpop.f32.mrb[0].mxu0
    %v760 = vadd.f32 %v187, %v759
    %v761 = vpop.f32.mrb[0].mxu0
    %v762 = vadd.f32 %v191, %v761
    %763 = vdwg.mxu0
    %v764 = vxor.u32 %v670, 2147483648
    %v765 = vxor.u32 %v672, 2147483648
    %v766 = vxor.u32 %v674, 2147483648
    %v767 = vxor.u32 %v676, 2147483648
    %v768 = vmul.f32 %v764, 1.442695
    %v769 = vpow.pop %v768
    %v770 = vmul.f32 %v765, 1.442695
    %v771 = vpow.pop %v770
    %v772 = vmul.f32 %v766, 1.442695
    %v773 = vpow.pop %v772
    %v774 = vmul.f32 %v767, 1.442695
    %v775 = vpow.pop %v774
    %v776 = vadd.f32 %v769, 1.0
    %v777 = vadd.f32 %v771, 1.0
    %v778 = vadd.f32 %v773, 1.0
    %v779 = vadd.f32 %v775, 1.0
    %v780 = vrcp.pop %v776
    %v781 = vmul.f32 1.0, %v780
    %v782 = vrcp.pop %v777
    %v783 = vmul.f32 1.0, %v782
    %v784 = vrcp.pop %v778
    %v785 = vmul.f32 1.0, %v784
    %v786 = vrcp.pop %v779
    %v787 = vmul.f32 1.0, %v786
    %v788 = vtanh.pop %v713
    %v789 = vtanh.pop %v715
    %v790 = vtanh.pop %v717
    %v791 = vtanh.pop %v719
    %v792 = vxor.u32 %v756, 2147483648
    %v793 = vxor.u32 %v758, 2147483648
    %v794 = vxor.u32 %v760, 2147483648
    %v795 = vxor.u32 %v762, 2147483648
    %v796 = vmul.f32 %v792, 1.442695
    %v797 = vpow.pop %v796
    %v798 = vmul.f32 %v793, 1.442695
    %v799 = vpow.pop %v798
    %v800 = vmul.f32 %v794, 1.442695
    %v801 = vpow.pop %v800
    %v802 = vmul.f32 %v795, 1.442695
    %v803 = vpow.pop %v802
    %v804 = vadd.f32 %v797, 1.0
    %v805 = vadd.f32 %v799, 1.0
    %v806 = vadd.f32 %v801, 1.0
    %v807 = vadd.f32 %v803, 1.0
    %v808 = vrcp.pop %v804
    %v809 = vmul.f32 1.0, %v808
    %v810 = vrcp.pop %v805
    %v811 = vmul.f32 1.0, %v810
    %v812 = vrcp.pop %v806
    %v813 = vmul.f32 1.0, %v812
    %v814 = vrcp.pop %v807
    %v815 = vmul.f32 1.0, %v814
    %v816 = vmul.f32 %v781, %v788
    %v817 = vmul.f32 %v783, %v789
    %v818 = vmul.f32 %v785, %v790
    %v819 = vmul.f32 %v787, %v791
    %v820 = vtanh.pop %v816
    %v821 = vtanh.pop %v817
    %v822 = vtanh.pop %v818
    %v823 = vtanh.pop %v819
    %v824 = vmul.f32 %v809, %v820
    %v825 = vmul.f32 %v811, %v821
    %v826 = vmul.f32 %v813, %v822
    %v827 = vmul.f32 %v815, %v823
    %v828 = vpack.c.bf16 %v826, %v824
    %v829 = vpack.c.bf16 %v827, %v825
    %v830 = vld [vmem:[#allocation7] sm:$0xff]
    %v831 = vld [vmem:[#allocation7 + $0x8] sm:$0xff]
    %v832 = vld [vmem:[#allocation7 + $0x10] sm:$0xff]
    %v833 = vld [vmem:[#allocation7 + $0x18] sm:$0xff]
    %v834 = vld [vmem:[#allocation7 + $0x20] sm:$0xff]
    %v835 = vld [vmem:[#allocation7 + $0x28] sm:$0xff]
    %v836 = vld [vmem:[#allocation7 + $0x30] sm:$0xff]
    %v837 = vld [vmem:[#allocation7 + $0x38] sm:$0xff]
    %v838 = vld [vmem:[#allocation7 + $0x40] sm:$0xff]
    %v839 = vld [vmem:[#allocation7 + $0x48] sm:$0xff]
    %v840 = vld [vmem:[#allocation7 + $0x50] sm:$0xff]
    %v841 = vld [vmem:[#allocation7 + $0x58] sm:$0xff]
    %v842 = vld [vmem:[#allocation7 + $0x60] sm:$0xff]
    %v843 = vld [vmem:[#allocation7 + $0x68] sm:$0xff]
    %v844 = vld [vmem:[#allocation7 + $0x70] sm:$0xff]
    %v845 = vld [vmem:[#allocation7 + $0x78] sm:$0xff]
    %v846 = vld [vmem:[#allocation7 + $0x80] sm:$0xff]
    %v847 = vld [vmem:[#allocation7 + $0x88] sm:$0xff]
    %v848 = vld [vmem:[#allocation7 + $0x90] sm:$0xff]
    %v849 = vld [vmem:[#allocation7 + $0x98] sm:$0xff]
    %v850 = vld [vmem:[#allocation7 + $0xa0] sm:$0xff]
    %v851 = vld [vmem:[#allocation7 + $0xa8] sm:$0xff]
    %v852 = vld [vmem:[#allocation7 + $0xb0] sm:$0xff]
    %v853 = vld [vmem:[#allocation7 + $0xb8] sm:$0xff]
    %v854 = vld [vmem:[#allocation7 + $0xc0] sm:$0xff]
    %v855 = vld [vmem:[#allocation7 + $0xc8] sm:$0xff]
    %v856 = vld [vmem:[#allocation7 + $0xd0] sm:$0xff]
    %v857 = vld [vmem:[#allocation7 + $0xd8] sm:$0xff]
    %v858 = vld [vmem:[#allocation7 + $0xe0] sm:$0xff]
    %v859 = vld [vmem:[#allocation7 + $0xe8] sm:$0xff]
    %v860 = vld [vmem:[#allocation7 + $0xf0] sm:$0xff]
    %v861 = vld [vmem:[#allocation7 + $0xf8] sm:$0xff]
    %v862 = vld [vmem:[#allocation7 + $0x100] sm:$0xff]
    %v863 = vld [vmem:[#allocation7 + $0x108] sm:$0xff]
    %v864 = vld [vmem:[#allocation7 + $0x110] sm:$0xff]
    %v865 = vld [vmem:[#allocation7 + $0x118] sm:$0xff]
    %v866 = vld [vmem:[#allocation7 + $0x120] sm:$0xff]
    %v867 = vld [vmem:[#allocation7 + $0x128] sm:$0xff]
    %v868 = vld [vmem:[#allocation7 + $0x130] sm:$0xff]
    %v869 = vld [vmem:[#allocation7 + $0x138] sm:$0xff]
    %v870 = vld [vmem:[#allocation7 + $0x140] sm:$0xff]
    %v871 = vld [vmem:[#allocation7 + $0x148] sm:$0xff]
    %v872 = vld [vmem:[#allocation7 + $0x150] sm:$0xff]
    %v873 = vld [vmem:[#allocation7 + $0x158] sm:$0xff]
    %v874 = vld [vmem:[#allocation7 + $0x160] sm:$0xff]
    %v875 = vld [vmem:[#allocation7 + $0x168] sm:$0xff]
    %v876 = vld [vmem:[#allocation7 + $0x170] sm:$0xff]
    %v877 = vld [vmem:[#allocation7 + $0x178] sm:$0xff]
    %v878 = vld [vmem:[#allocation7 + $0x180] sm:$0xff]
    %v879 = vld [vmem:[#allocation7 + $0x188] sm:$0xff]
    %v880 = vld [vmem:[#allocation7 + $0x190] sm:$0xff]
    %v881 = vld [vmem:[#allocation7 + $0x198] sm:$0xff]
    %v882 = vld [vmem:[#allocation7 + $0x1a0] sm:$0xff]
    %v883 = vld [vmem:[#allocation7 + $0x1a8] sm:$0xff]
    %v884 = vld [vmem:[#allocation7 + $0x1b0] sm:$0xff]
    %v885 = vld [vmem:[#allocation7 + $0x1b8] sm:$0xff]
    %v886 = vld [vmem:[#allocation7 + $0x1c0] sm:$0xff]
    %v887 = vld [vmem:[#allocation7 + $0x1c8] sm:$0xff]
    %v888 = vld [vmem:[#allocation7 + $0x1d0] sm:$0xff]
    %v889 = vld [vmem:[#allocation7 + $0x1d8] sm:$0xff]
    %v890 = vld [vmem:[#allocation7 + $0x1e0] sm:$0xff]
    %v891 = vld [vmem:[#allocation7 + $0x1e8] sm:$0xff]
    %v892 = vld [vmem:[#allocation7 + $0x1f0] sm:$0xff]
    %v893 = vld [vmem:[#allocation7 + $0x1f8] sm:$0xff]
    %v894 = vld [vmem:[#allocation7 + $0x200] sm:$0xff]
    %v895 = vld [vmem:[#allocation7 + $0x208] sm:$0xff]
    %v896 = vld [vmem:[#allocation7 + $0x210] sm:$0xff]
    %v897 = vld [vmem:[#allocation7 + $0x218] sm:$0xff]
    %v898 = vld [vmem:[#allocation7 + $0x220] sm:$0xff]
    %v899 = vld [vmem:[#allocation7 + $0x228] sm:$0xff]
    %v900 = vld [vmem:[#allocation7 + $0x230] sm:$0xff]
    %v901 = vld [vmem:[#allocation7 + $0x238] sm:$0xff]
    %v902 = vld [vmem:[#allocation7 + $0x240] sm:$0xff]
    %v903 = vld [vmem:[#allocation7 + $0x248] sm:$0xff]
    %v904 = vld [vmem:[#allocation7 + $0x250] sm:$0xff]
    %v905 = vld [vmem:[#allocation7 + $0x258] sm:$0xff]
    %v906 = vld [vmem:[#allocation7 + $0x260] sm:$0xff]
    %v907 = vld [vmem:[#allocation7 + $0x268] sm:$0xff]
    %v908 = vld [vmem:[#allocation7 + $0x270] sm:$0xff]
    %v909 = vld [vmem:[#allocation7 + $0x278] sm:$0xff]
    %v910 = vld [vmem:[#allocation7 + $0x280] sm:$0xff]
    %v911 = vld [vmem:[#allocation7 + $0x288] sm:$0xff]
    %v912 = vld [vmem:[#allocation7 + $0x290] sm:$0xff]
    %v913 = vld [vmem:[#allocation7 + $0x298] sm:$0xff]
    %v914 = vld [vmem:[#allocation7 + $0x2a0] sm:$0xff]
    %v915 = vld [vmem:[#allocation7 + $0x2a8] sm:$0xff]
    %v916 = vld [vmem:[#allocation7 + $0x2b0] sm:$0xff]
    %v917 = vld [vmem:[#allocation7 + $0x2b8] sm:$0xff]
    %v918 = vld [vmem:[#allocation7 + $0x2c0] sm:$0xff]
    %v919 = vld [vmem:[#allocation7 + $0x2c8] sm:$0xff]
    %v920 = vld [vmem:[#allocation7 + $0x2d0] sm:$0xff]
    %v921 = vld [vmem:[#allocation7 + $0x2d8] sm:$0xff]
    %v922 = vld [vmem:[#allocation7 + $0x2e0] sm:$0xff]
    %v923 = vld [vmem:[#allocation7 + $0x2e8] sm:$0xff]
    %v924 = vld [vmem:[#allocation7 + $0x2f0] sm:$0xff]
    %v925 = vld [vmem:[#allocation7 + $0x2f8] sm:$0xff]
    %v926 = vld [vmem:[%s4] sm:$0x3f]
    %v928 = vlaneseq
    %v929 = vshrl.u32 %v928, 7
    %v930 = vsub.s32 0, %v929
    %v931 = vrot.slane %v926, %v930
    %v932 = vlaneseq
    %v933 = vshrl.u32 %v932, 7
    %v934 = vsub.s32 1, %v933
    %v935 = vrot.slane %v926, %v934
    %v936 = vlaneseq
    %v937 = vshrl.u32 %v936, 7
    %v938 = vsub.s32 2, %v937
    %v939 = vrot.slane %v926, %v938
    %v940 = vlaneseq
    %v941 = vshrl.u32 %v940, 7
    %v942 = vsub.s32 3, %v941
    %v943 = vrot.slane %v926, %v942
    %v944 = vlaneseq
    %v945 = vshrl.u32 %v944, 7
    %v946 = vsub.s32 4, %v945
    %v947 = vrot.slane %v926, %v946
    %v948 = vlaneseq
    %v949 = vshrl.u32 %v948, 7
    %v950 = vsub.s32 5, %v949
    %v951 = vrot.slane %v926, %v950
    %v1054 = vunpack.c.l.b16 %v830
    %v1055 = vunpack.c.h.b16 %v830
    %v1056 = vunpack.c.l.b16 %v831
    %v1057 = vunpack.c.h.b16 %v831
    %v1058 = vunpack.c.l.b16 %v832
    %v1059 = vunpack.c.h.b16 %v832
    %v1060 = vunpack.c.l.b16 %v833
    %v1061 = vunpack.c.h.b16 %v833
    %v1062 = vunpack.c.l.b16 %v834
    %v1063 = vunpack.c.h.b16 %v834
    %v1064 = vunpack.c.l.b16 %v835
    %v1065 = vunpack.c.h.b16 %v835
    %v1066 = vunpack.c.l.b16 %v836
    %v1067 = vunpack.c.h.b16 %v836
    %v1068 = vunpack.c.l.b16 %v837
    %v1069 = vunpack.c.h.b16 %v837
    %v1070 = vunpack.c.l.b16 %v838
    %v1071 = vunpack.c.h.b16 %v838
    %v1072 = vunpack.c.l.b16 %v839
    %v1073 = vunpack.c.h.b16 %v839
    %v1074 = vunpack.c.l.b16 %v840
    %v1075 = vunpack.c.h.b16 %v840
    %v1076 = vunpack.c.l.b16 %v841
    %v1077 = vunpack.c.h.b16 %v841
    %v1078 = vunpack.c.l.b16 %v842
    %v1079 = vunpack.c.h.b16 %v842
    %v1080 = vunpack.c.l.b16 %v843
    %v1081 = vunpack.c.h.b16 %v843
    %v1082 = vunpack.c.l.b16 %v844
    %v1083 = vunpack.c.h.b16 %v844
    %v1084 = vunpack.c.l.b16 %v845
    %v1085 = vunpack.c.h.b16 %v845
    %v1086 = vunpack.c.l.b16 %v846
    %v1087 = vunpack.c.h.b16 %v846
    %v1088 = vunpack.c.l.b16 %v847
    %v1089 = vunpack.c.h.b16 %v847
    %v1090 = vunpack.c.l.b16 %v848
    %v1091 = vunpack.c.h.b16 %v848
    %v1092 = vunpack.c.l.b16 %v849
    %v1093 = vunpack.c.h.b16 %v849
    %v1094 = vunpack.c.l.b16 %v850
    %v1095 = vunpack.c.h.b16 %v850
    %v1096 = vunpack.c.l.b16 %v851
    %v1097 = vunpack.c.h.b16 %v851
    %v1098 = vunpack.c.l.b16 %v852
    %v1099 = vunpack.c.h.b16 %v852
    %v1100 = vunpack.c.l.b16 %v853
    %v1101 = vunpack.c.h.b16 %v853
    %v1102 = vunpack.c.l.b16 %v854
    %v1103 = vunpack.c.h.b16 %v854
    %v1104 = vunpack.c.l.b16 %v855
    %v1105 = vunpack.c.h.b16 %v855
    %v1106 = vunpack.c.l.b16 %v856
    %v1107 = vunpack.c.h.b16 %v856
    %v1108 = vunpack.c.l.b16 %v857
    %v1109 = vunpack.c.h.b16 %v857
    %v1110 = vunpack.c.l.b16 %v858
    %v1111 = vunpack.c.h.b16 %v858
    %v1112 = vunpack.c.l.b16 %v859
    %v1113 = vunpack.c.h.b16 %v859
    %v1114 = vunpack.c.l.b16 %v860
    %v1115 = vunpack.c.h.b16 %v860
    %v1116 = vunpack.c.l.b16 %v861
    %v1117 = vunpack.c.h.b16 %v861
    %v1118 = vunpack.c.l.b16 %v862
    %v1119 = vunpack.c.h.b16 %v862
    %v1120 = vunpack.c.l.b16 %v863
    %v1121 = vunpack.c.h.b16 %v863
    %v1122 = vunpack.c.l.b16 %v864
    %v1123 = vunpack.c.h.b16 %v864
    %v1124 = vunpack.c.l.b16 %v865
    %v1125 = vunpack.c.h.b16 %v865
    %v1126 = vunpack.c.l.b16 %v866
    %v1127 = vunpack.c.h.b16 %v866
    %v1128 = vunpack.c.l.b16 %v867
    %v1129 = vunpack.c.h.b16 %v867
    %v1130 = vunpack.c.l.b16 %v868
    %v1131 = vunpack.c.h.b16 %v868
    %v1132 = vunpack.c.l.b16 %v869
    %v1133 = vunpack.c.h.b16 %v869
    %v1134 = vunpack.c.l.b16 %v870
    %v1135 = vunpack.c.h.b16 %v870
    %v1136 = vunpack.c.l.b16 %v871
    %v1137 = vunpack.c.h.b16 %v871
    %v1138 = vunpack.c.l.b16 %v872
    %v1139 = vunpack.c.h.b16 %v872
    %v1140 = vunpack.c.l.b16 %v873
    %v1141 = vunpack.c.h.b16 %v873
    %v1142 = vunpack.c.l.b16 %v874
    %v1143 = vunpack.c.h.b16 %v874
    %v1144 = vunpack.c.l.b16 %v875
    %v1145 = vunpack.c.h.b16 %v875
    %v1146 = vunpack.c.l.b16 %v876
    %v1147 = vunpack.c.h.b16 %v876
    %v1148 = vunpack.c.l.b16 %v877
    %v1149 = vunpack.c.h.b16 %v877
    %v1150 = vunpack.c.l.b16 %v878
    %v1151 = vunpack.c.h.b16 %v878
    %v1152 = vunpack.c.l.b16 %v879
    %v1153 = vunpack.c.h.b16 %v879
    %v1154 = vunpack.c.l.b16 %v880
    %v1155 = vunpack.c.h.b16 %v880
    %v1156 = vunpack.c.l.b16 %v881
    %v1157 = vunpack.c.h.b16 %v881
    %v1158 = vunpack.c.l.b16 %v882
    %v1159 = vunpack.c.h.b16 %v882
    %v1160 = vunpack.c.l.b16 %v883
    %v1161 = vunpack.c.h.b16 %v883
    %v1162 = vunpack.c.l.b16 %v884
    %v1163 = vunpack.c.h.b16 %v884
    %v1164 = vunpack.c.l.b16 %v885
    %v1165 = vunpack.c.h.b16 %v885
    %v1166 = vunpack.c.l.b16 %v886
    %v1167 = vunpack.c.h.b16 %v886
    %v1168 = vunpack.c.l.b16 %v887
    %v1169 = vunpack.c.h.b16 %v887
    %v1170 = vunpack.c.l.b16 %v888
    %v1171 = vunpack.c.h.b16 %v888
    %v1172 = vunpack.c.l.b16 %v889
    %v1173 = vunpack.c.h.b16 %v889
    %v1174 = vunpack.c.l.b16 %v890
    %v1175 = vunpack.c.h.b16 %v890
    %v1176 = vunpack.c.l.b16 %v891
    %v1177 = vunpack.c.h.b16 %v891
    %v1178 = vunpack.c.l.b16 %v892
    %v1179 = vunpack.c.h.b16 %v892
    %v1180 = vunpack.c.l.b16 %v893
    %v1181 = vunpack.c.h.b16 %v893
    %v1182 = vunpack.c.l.b16 %v894
    %v1183 = vunpack.c.h.b16 %v894
    %v1184 = vunpack.c.l.b16 %v895
    %v1185 = vunpack.c.h.b16 %v895
    %v1186 = vunpack.c.l.b16 %v896
    %v1187 = vunpack.c.h.b16 %v896
    %v1188 = vunpack.c.l.b16 %v897
    %v1189 = vunpack.c.h.b16 %v897
    %v1190 = vunpack.c.l.b16 %v898
    %v1191 = vunpack.c.h.b16 %v898
    %v1192 = vunpack.c.l.b16 %v899
    %v1193 = vunpack.c.h.b16 %v899
    %v1194 = vunpack.c.l.b16 %v900
    %v1195 = vunpack.c.h.b16 %v900
    %v1196 = vunpack.c.l.b16 %v901
    %v1197 = vunpack.c.h.b16 %v901
    %v1198 = vunpack.c.l.b16 %v902
    %v1199 = vunpack.c.h.b16 %v902
    %v1200 = vunpack.c.l.b16 %v903
    %v1201 = vunpack.c.h.b16 %v903
    %v1202 = vunpack.c.l.b16 %v904
    %v1203 = vunpack.c.h.b16 %v904
    %v1204 = vunpack.c.l.b16 %v905
    %v1205 = vunpack.c.h.b16 %v905
    %v1206 = vunpack.c.l.b16 %v906
    %v1207 = vunpack.c.h.b16 %v906
    %v1208 = vunpack.c.l.b16 %v907
    %v1209 = vunpack.c.h.b16 %v907
    %v1210 = vunpack.c.l.b16 %v908
    %v1211 = vunpack.c.h.b16 %v908
    %v1212 = vunpack.c.l.b16 %v909
    %v1213 = vunpack.c.h.b16 %v909
    %v1214 = vunpack.c.l.b16 %v910
    %v1215 = vunpack.c.h.b16 %v910
    %v1216 = vunpack.c.l.b16 %v911
    %v1217 = vunpack.c.h.b16 %v911
    %v1218 = vunpack.c.l.b16 %v912
    %v1219 = vunpack.c.h.b16 %v912
    %v1220 = vunpack.c.l.b16 %v913
    %v1221 = vunpack.c.h.b16 %v913
    %v1222 = vunpack.c.l.b16 %v914
    %v1223 = vunpack.c.h.b16 %v914
    %v1224 = vunpack.c.l.b16 %v915
    %v1225 = vunpack.c.h.b16 %v915
    %v1226 = vunpack.c.l.b16 %v916
    %v1227 = vunpack.c.h.b16 %v916
    %v1228 = vunpack.c.l.b16 %v917
    %v1229 = vunpack.c.h.b16 %v917
    %v1230 = vunpack.c.l.b16 %v918
    %v1231 = vunpack.c.h.b16 %v918
    %v1232 = vunpack.c.l.b16 %v919
    %v1233 = vunpack.c.h.b16 %v919
    %v1234 = vunpack.c.l.b16 %v920
    %v1235 = vunpack.c.h.b16 %v920
    %v1236 = vunpack.c.l.b16 %v921
    %v1237 = vunpack.c.h.b16 %v921
    %v1238 = vunpack.c.l.b16 %v922
    %v1239 = vunpack.c.h.b16 %v922
    %v1240 = vunpack.c.l.b16 %v923
    %v1241 = vunpack.c.h.b16 %v923
    %v1242 = vunpack.c.l.b16 %v924
    %v1243 = vunpack.c.h.b16 %v924
    %v1244 = vunpack.c.l.b16 %v925
    %v1245 = vunpack.c.h.b16 %v925
    %v1246 = vpack.c.b16 %v1060, %v1054
    %v1247 = vpack.c.b16 %v1061, %v1055
    %v1248 = vpack.c.b16 %v1062, %v1056
    %v1249 = vpack.c.b16 %v1063, %v1057
    %v1250 = vpack.c.b16 %v1064, %v1058
    %v1251 = vpack.c.b16 %v1065, %v1059
    %v1252 = vpack.c.b16 %v1072, %v1066
    %v1253 = vpack.c.b16 %v1073, %v1067
    %v1254 = vpack.c.b16 %v1074, %v1068
    %v1255 = vpack.c.b16 %v1075, %v1069
    %v1256 = vpack.c.b16 %v1076, %v1070
    %v1257 = vpack.c.b16 %v1077, %v1071
    %v1258 = vpack.c.b16 %v1084, %v1078
    %v1259 = vpack.c.b16 %v1085, %v1079
    %v1260 = vpack.c.b16 %v1086, %v1080
    %v1261 = vpack.c.b16 %v1087, %v1081
    %v1262 = vpack.c.b16 %v1088, %v1082
    %v1263 = vpack.c.b16 %v1089, %v1083
    %v1264 = vpack.c.b16 %v1096, %v1090
    %v1265 = vpack.c.b16 %v1097, %v1091
    %v1266 = vpack.c.b16 %v1098, %v1092
    %v1267 = vpack.c.b16 %v1099, %v1093
    %v1268 = vpack.c.b16 %v1100, %v1094
    %v1269 = vpack.c.b16 %v1101, %v1095
    %v1270 = vpack.c.b16 %v1108, %v1102
    %v1271 = vpack.c.b16 %v1109, %v1103
    %v1272 = vpack.c.b16 %v1110, %v1104
    %v1273 = vpack.c.b16 %v1111, %v1105
    %v1274 = vpack.c.b16 %v1112, %v1106
    %v1275 = vpack.c.b16 %v1113, %v1107
    %v1276 = vpack.c.b16 %v1120, %v1114
    %v1277 = vpack.c.b16 %v1121, %v1115
    %v1278 = vpack.c.b16 %v1122, %v1116
    %v1279 = vpack.c.b16 %v1123, %v1117
    %v1280 = vpack.c.b16 %v1124, %v1118
    %v1281 = vpack.c.b16 %v1125, %v1119
    %v1282 = vpack.c.b16 %v1132, %v1126
    %v1283 = vpack.c.b16 %v1133, %v1127
    %v1284 = vpack.c.b16 %v1134, %v1128
    %v1285 = vpack.c.b16 %v1135, %v1129
    %v1286 = vpack.c.b16 %v1136, %v1130
    %v1287 = vpack.c.b16 %v1137, %v1131
    %v1288 = vpack.c.b16 %v1144, %v1138
    %v1289 = vpack.c.b16 %v1145, %v1139
    %v1290 = vpack.c.b16 %v1146, %v1140
    %v1291 = vpack.c.b16 %v1147, %v1141
    %v1292 = vpack.c.b16 %v1148, %v1142
    %v1293 = vpack.c.b16 %v1149, %v1143
    %v1294 = vpack.c.b16 %v1156, %v1150
    %v1295 = vpack.c.b16 %v1157, %v1151
    %v1296 = vpack.c.b16 %v1158, %v1152
    %v1297 = vpack.c.b16 %v1159, %v1153
    %v1298 = vpack.c.b16 %v1160, %v1154
    %v1299 = vpack.c.b16 %v1161, %v1155
    %v1300 = vpack.c.b16 %v1168, %v1162
    %v1301 = vpack.c.b16 %v1169, %v1163
    %v1302 = vpack.c.b16 %v1170, %v1164
    %v1303 = vpack.c.b16 %v1171, %v1165
    %v1304 = vpack.c.b16 %v1172, %v1166
    %v1305 = vpack.c.b16 %v1173, %v1167
    %v1306 = vpack.c.b16 %v1180, %v1174
    %v1307 = vpack.c.b16 %v1181, %v1175
    %v1308 = vpack.c.b16 %v1182, %v1176
    %v1309 = vpack.c.b16 %v1183, %v1177
    %v1310 = vpack.c.b16 %v1184, %v1178
    %v1311 = vpack.c.b16 %v1185, %v1179
    %v1312 = vpack.c.b16 %v1192, %v1186
    %v1313 = vpack.c.b16 %v1193, %v1187
    %v1314 = vpack.c.b16 %v1194, %v1188
    %v1315 = vpack.c.b16 %v1195, %v1189
    %v1316 = vpack.c.b16 %v1196, %v1190
    %v1317 = vpack.c.b16 %v1197, %v1191
    %v1318 = vpack.c.b16 %v1204, %v1198
    %v1319 = vpack.c.b16 %v1205, %v1199
    %v1320 = vpack.c.b16 %v1206, %v1200
    %v1321 = vpack.c.b16 %v1207, %v1201
    %v1322 = vpack.c.b16 %v1208, %v1202
    %v1323 = vpack.c.b16 %v1209, %v1203
    %v1324 = vpack.c.b16 %v1216, %v1210
    %v1325 = vpack.c.b16 %v1217, %v1211
    %v1326 = vpack.c.b16 %v1218, %v1212
    %v1327 = vpack.c.b16 %v1219, %v1213
    %v1328 = vpack.c.b16 %v1220, %v1214
    %v1329 = vpack.c.b16 %v1221, %v1215
    %v1330 = vpack.c.b16 %v1228, %v1222
    %v1331 = vpack.c.b16 %v1229, %v1223
    %v1332 = vpack.c.b16 %v1230, %v1224
    %v1333 = vpack.c.b16 %v1231, %v1225
    %v1334 = vpack.c.b16 %v1232, %v1226
    %v1335 = vpack.c.b16 %v1233, %v1227
    %v1336 = vpack.c.b16 %v1240, %v1234
    %v1337 = vpack.c.b16 %v1241, %v1235
    %v1338 = vpack.c.b16 %v1242, %v1236
    %v1339 = vpack.c.b16 %v1243, %v1237
    %v1340 = vpack.c.b16 %v1244, %v1238
    %v1341 = vpack.c.b16 %v1245, %v1239
    %1438 = vmatprep.subr.bf16.mxu0 %v1247
    %1439 = vmatpush1.bf16.msra.mxu0 %v1246
    %1440 = vmatprep.subr.bf16.mxu0 %v1253
    %1441 = vmatpush1.bf16.msra.mxu0 %v1252
    %1442 = vmatprep.subr.bf16.mxu0 %v1259
    %1443 = vmatpush1.bf16.msra.mxu0 %v1258
    %1444 = vmatprep.subr.bf16.mxu0 %v1265
    %1445 = vmatpush1.bf16.msra.mxu0 %v1264
    %1446 = vmatprep.subr.bf16.mxu0 %v1271
    %1447 = vmatpush1.bf16.msra.mxu0 %v1270
    %1448 = vmatprep.subr.bf16.mxu0 %v1277
    %1449 = vmatpush1.bf16.msra.mxu0 %v1276
    %1450 = vmatprep.subr.bf16.mxu0 %v1283
    %1451 = vmatpush1.bf16.msra.mxu0 %v1282
    %1452 = vmatprep.subr.bf16.mxu0 %v1289
    %1453 = vmatpush1.bf16.msra.mxu0 %v1288
    %1454 = vmatprep.subr.bf16.mxu0 %v1295
    %1455 = vmatpush1.bf16.msra.mxu0 %v1294
    %1456 = vmatprep.subr.bf16.mxu0 %v1301
    %1457 = vmatpush1.bf16.msra.mxu0 %v1300
    %1458 = vmatprep.subr.bf16.mxu0 %v1307
    %1459 = vmatpush1.bf16.msra.mxu0 %v1306
    %1460 = vmatprep.subr.bf16.mxu0 %v1313
    %1461 = vmatpush1.bf16.msra.mxu0 %v1312
    %1462 = vmatprep.subr.bf16.mxu0 %v1319
    %1463 = vmatpush1.bf16.msra.mxu0 %v1318
    %1464 = vmatprep.subr.bf16.mxu0 %v1325
    %1465 = vmatpush1.bf16.msra.mxu0 %v1324
    %1466 = vmatprep.subr.bf16.mxu0 %v1331
    %1467 = vmatpush1.bf16.msra.mxu0 %v1330
    %1468 = vmatprep.subr.bf16.mxu0 %v1337
    %1469 = vmatpush1.bf16.msra.mxu0 %v1336
    %1470 = vmatprep.mubr.bf16.mxu0 %v829
    %1471 = vmatmul.mubr.bf16.gmra.mrb[0].mxu0 %v828
    %v1472 = vpop.f32.mrb[0].mxu0
    %v1473 = vadd.f32 %v931, %v1472
    %v1474 = vpop.f32.mrb[0].mxu0
    %v1475 = vadd.f32 %v935, %v1474
    %v1476 = vpop.f32.mrb[0].mxu0
    %v1477 = vadd.f32 %v931, %v1476
    %v1478 = vpop.f32.mrb[0].mxu0
    %v1479 = vadd.f32 %v935, %v1478
    %1480 = vdwg.mxu0
    %1481 = vmatprep.subr.bf16.mxu0 %v1249
    %1482 = vmatpush1.bf16.msra.mxu0 %v1248
    %1483 = vmatprep.subr.bf16.mxu0 %v1255
    %1484 = vmatpush1.bf16.msra.mxu0 %v1254
    %1485 = vmatprep.subr.bf16.mxu0 %v1261
    %1486 = vmatpush1.bf16.msra.mxu0 %v1260
    %1487 = vmatprep.subr.bf16.mxu0 %v1267
    %1488 = vmatpush1.bf16.msra.mxu0 %v1266
    %1489 = vmatprep.subr.bf16.mxu0 %v1273
    %1490 = vmatpush1.bf16.msra.mxu0 %v1272
    %1491 = vmatprep.subr.bf16.mxu0 %v1279
    %1492 = vmatpush1.bf16.msra.mxu0 %v1278
    %1493 = vmatprep.subr.bf16.mxu0 %v1285
    %1494 = vmatpush1.bf16.msra.mxu0 %v1284
    %1495 = vmatprep.subr.bf16.mxu0 %v1291
    %1496 = vmatpush1.bf16.msra.mxu0 %v1290
    %1497 = vmatprep.subr.bf16.mxu0 %v1297
    %1498 = vmatpush1.bf16.msra.mxu0 %v1296
    %1499 = vmatprep.subr.bf16.mxu0 %v1303
    %1500 = vmatpush1.bf16.msra.mxu0 %v1302
    %1501 = vmatprep.subr.bf16.mxu0 %v1309
    %1502 = vmatpush1.bf16.msra.mxu0 %v1308
    %1503 = vmatprep.subr.bf16.mxu0 %v1315
    %1504 = vmatpush1.bf16.msra.mxu0 %v1314
    %1505 = vmatprep.subr.bf16.mxu0 %v1321
    %1506 = vmatpush1.bf16.msra.mxu0 %v1320
    %1507 = vmatprep.subr.bf16.mxu0 %v1327
    %1508 = vmatpush1.bf16.msra.mxu0 %v1326
    %1509 = vmatprep.subr.bf16.mxu0 %v1333
    %1510 = vmatpush1.bf16.msra.mxu0 %v1332
    %1511 = vmatprep.subr.bf16.mxu0 %v1339
    %1512 = vmatpush1.bf16.msra.mxu0 %v1338
    %1513 = vmatprep.mubr.bf16.mxu0 %v829
    %1514 = vmatmul.mubr.bf16.gmra.mrb[0].mxu0 %v828
    %v1515 = vpop.f32.mrb[0].mxu0
    %v1516 = vadd.f32 %v939, %v1515
    %v1517 = vpop.f32.mrb[0].mxu0
    %v1518 = vadd.f32 %v943, %v1517
    %v1519 = vpop.f32.mrb[0].mxu0
    %v1520 = vadd.f32 %v939, %v1519
    %v1521 = vpop.f32.mrb[0].mxu0
    %v1522 = vadd.f32 %v943, %v1521
    %1523 = vdwg.mxu0
    %1524 = vmatprep.subr.bf16.mxu0 %v1251
    %1525 = vmatpush1.bf16.msra.mxu0 %v1250
    %1526 = vmatprep.subr.bf16.mxu0 %v1257
    %1527 = vmatpush1.bf16.msra.mxu0 %v1256
    %1528 = vmatprep.subr.bf16.mxu0 %v1263
    %1529 = vmatpush1.bf16.msra.mxu0 %v1262
    %1530 = vmatprep.subr.bf16.mxu0 %v1269
    %1531 = vmatpush1.bf16.msra.mxu0 %v1268
    %1532 = vmatprep.subr.bf16.mxu0 %v1275
    %1533 = vmatpush1.bf16.msra.mxu0 %v1274
    %1534 = vmatprep.subr.bf16.mxu0 %v1281
    %1535 = vmatpush1.bf16.msra.mxu0 %v1280
    %1536 = vmatprep.subr.bf16.mxu0 %v1287
    %1537 = vmatpush1.bf16.msra.mxu0 %v1286
    %1538 = vmatprep.subr.bf16.mxu0 %v1293
    %1539 = vmatpush1.bf16.msra.mxu0 %v1292
    %1540 = vmatprep.subr.bf16.mxu0 %v1299
    %1541 = vmatpush1.bf16.msra.mxu0 %v1298
    %1542 = vmatprep.subr.bf16.mxu0 %v1305
    %1543 = vmatpush1.bf16.msra.mxu0 %v1304
    %1544 = vmatprep.subr.bf16.mxu0 %v1311
    %1545 = vmatpush1.bf16.msra.mxu0 %v1310
    %1546 = vmatprep.subr.bf16.mxu0 %v1317
    %1547 = vmatpush1.bf16.msra.mxu0 %v1316
    %1548 = vmatprep.subr.bf16.mxu0 %v1323
    %1549 = vmatpush1.bf16.msra.mxu0 %v1322
    %1550 = vmatprep.subr.bf16.mxu0 %v1329
    %1551 = vmatpush1.bf16.msra.mxu0 %v1328
    %1552 = vmatprep.subr.bf16.mxu0 %v1335
    %1553 = vmatpush1.bf16.msra.mxu0 %v1334
    %1554 = vmatprep.subr.bf16.mxu0 %v1341
    %1555 = vmatpush1.bf16.msra.mxu0 %v1340
    %1556 = vmatprep.mubr.bf16.mxu0 %v829
    %1557 = vmatmul.mubr.bf16.gmra.mrb[0].mxu0 %v828
    %v1558 = vpop.f32.mrb[0].mxu0
    %v1559 = vadd.f32 %v947, %v1558
    %v1560 = vpop.f32.mrb[0].mxu0
    %v1561 = vadd.f32 %v951, %v1560
    %v1562 = vpop.f32.mrb[0].mxu0
    %v1563 = vadd.f32 %v947, %v1562
    %v1564 = vpop.f32.mrb[0].mxu0
    %v1565 = vadd.f32 %v951, %v1564
    %1566 = vdwg.mxu0
    %v1567 = vxor.u32 %v1473, 2147483648
    %v1568 = vxor.u32 %v1475, 2147483648
    %v1569 = vxor.u32 %v1477, 2147483648
    %v1570 = vxor.u32 %v1479, 2147483648
    %v1571 = vmul.f32 %v1567, 1.442695
    %v1572 = vpow.pop %v1571
    %v1573 = vmul.f32 %v1568, 1.442695
    %v1574 = vpow.pop %v1573
    %v1575 = vmul.f32 %v1569, 1.442695
    %v1576 = vpow.pop %v1575
    %v1577 = vmul.f32 %v1570, 1.442695
    %v1578 = vpow.pop %v1577
    %v1579 = vadd.f32 %v1572, 1.0
    %v1580 = vadd.f32 %v1574, 1.0
    %v1581 = vadd.f32 %v1576, 1.0
    %v1582 = vadd.f32 %v1578, 1.0
    %v1583 = vrcp.pop %v1579
    %v1584 = vmul.f32 1.0, %v1583
    %v1585 = vrcp.pop %v1580
    %v1586 = vmul.f32 1.0, %v1585
    %v1587 = vrcp.pop %v1581
    %v1588 = vmul.f32 1.0, %v1587
    %v1589 = vrcp.pop %v1582
    %v1590 = vmul.f32 1.0, %v1589
    %v1591 = vtanh.pop %v1516
    %v1592 = vtanh.pop %v1518
    %v1593 = vtanh.pop %v1520
    %v1594 = vtanh.pop %v1522
    %v1595 = vxor.u32 %v1559, 2147483648
    %v1596 = vxor.u32 %v1561, 2147483648
    %v1597 = vxor.u32 %v1563, 2147483648
    %v1598 = vxor.u32 %v1565, 2147483648
    %v1599 = vmul.f32 %v1595, 1.442695
    %v1600 = vpow.pop %v1599
    %v1601 = vmul.f32 %v1596, 1.442695
    %v1602 = vpow.pop %v1601
    %v1603 = vmul.f32 %v1597, 1.442695
    %v1604 = vpow.pop %v1603
    %v1605 = vmul.f32 %v1598, 1.442695
    %v1606 = vpow.pop %v1605
    %v1607 = vadd.f32 %v1600, 1.0
    %v1608 = vadd.f32 %v1602, 1.0
    %v1609 = vadd.f32 %v1604, 1.0
    %v1610 = vadd.f32 %v1606, 1.0
    %v1611 = vrcp.pop %v1607
    %v1612 = vmul.f32 1.0, %v1611
    %v1613 = vrcp.pop %v1608
    %v1614 = vmul.f32 1.0, %v1613
    %v1615 = vrcp.pop %v1609
    %v1616 = vmul.f32 1.0, %v1615
    %v1617 = vrcp.pop %v1610
    %v1618 = vmul.f32 1.0, %v1617
    %v1619 = vmul.f32 %v1584, %v1591
    %v1620 = vmul.f32 %v1586, %v1592
    %v1621 = vmul.f32 %v1588, %v1593
    %v1622 = vmul.f32 %v1590, %v1594
    %v1623 = vtanh.pop %v1619
    %v1624 = vtanh.pop %v1620
    %v1625 = vtanh.pop %v1621
    %v1626 = vtanh.pop %v1622
    %v1627 = vmul.f32 %v1612, %v1623
    %v1628 = vmul.f32 %v1614, %v1624
    %v1629 = vmul.f32 %v1616, %v1625
    %v1630 = vmul.f32 %v1618, %v1626
    %v1631 = vpack.c.bf16 %v1629, %v1627
    %v1632 = vpack.c.bf16 %v1630, %v1628
    %v1633 = vld [vmem:[#allocation8] sm:$0xf]
    %v1634 = vld [vmem:[#allocation8 + $0x4] sm:$0xf]
    %v1635 = vld [vmem:[#allocation8 + $0x8] sm:$0xf]
    %v1636 = vld [vmem:[#allocation8 + $0xc] sm:$0xf]
    %v1637 = vld [vmem:[#allocation8 + $0x10] sm:$0xf]
    %v1638 = vld [vmem:[#allocation8 + $0x14] sm:$0xf]
    %v1639 = vld [vmem:[#allocation8 + $0x18] sm:$0xf]
    %v1640 = vld [vmem:[#allocation8 + $0x1c] sm:$0xf]
    %v1641 = vld [vmem:[#allocation8 + $0x20] sm:$0xf]
    %v1642 = vld [vmem:[#allocation8 + $0x24] sm:$0xf]
    %v1643 = vld [vmem:[#allocation8 + $0x28] sm:$0xf]
    %v1644 = vld [vmem:[#allocation8 + $0x2c] sm:$0xf]
    %v1645 = vld [vmem:[#allocation8 + $0x30] sm:$0xf]
    %v1646 = vld [vmem:[#allocation8 + $0x34] sm:$0xf]
    %v1647 = vld [vmem:[#allocation8 + $0x38] sm:$0xf]
    %v1648 = vld [vmem:[#allocation8 + $0x3c] sm:$0xf]
    %v1649 = vld [vmem:[#allocation8 + $0x40] sm:$0xf]
    %v1650 = vld [vmem:[#allocation8 + $0x44] sm:$0xf]
    %v1651 = vld [vmem:[#allocation8 + $0x48] sm:$0xf]
    %v1652 = vld [vmem:[#allocation8 + $0x4c] sm:$0xf]
    %v1653 = vld [vmem:[#allocation8 + $0x50] sm:$0xf]
    %v1654 = vld [vmem:[#allocation8 + $0x54] sm:$0xf]
    %v1655 = vld [vmem:[#allocation8 + $0x58] sm:$0xf]
    %v1656 = vld [vmem:[#allocation8 + $0x5c] sm:$0xf]
    %v1657 = vld [vmem:[#allocation8 + $0x60] sm:$0xf]
    %v1658 = vld [vmem:[#allocation8 + $0x64] sm:$0xf]
    %v1659 = vld [vmem:[#allocation8 + $0x68] sm:$0xf]
    %v1660 = vld [vmem:[#allocation8 + $0x6c] sm:$0xf]
    %v1661 = vld [vmem:[#allocation8 + $0x70] sm:$0xf]
    %v1662 = vld [vmem:[#allocation8 + $0x74] sm:$0xf]
    %v1663 = vld [vmem:[#allocation8 + $0x78] sm:$0xf]
    %v1664 = vld [vmem:[#allocation8 + $0x7c] sm:$0xf]
    %v1665 = vld [vmem:[%s6] sm:$0x1]
    %v1667 = vlaneseq
    %v1668 = vshrl.u32 %v1667, 7
    %v1669 = vsub.s32 0, %v1668
    %v1670 = vrot.slane %v1665, %v1669
    %v1704 = vunpack.c.l.b16 %v1633
    %v1705 = vunpack.c.l.b16 %v1634
    %v1706 = vunpack.c.l.b16 %v1635
    %v1707 = vunpack.c.l.b16 %v1636
    %v1708 = vunpack.c.l.b16 %v1637
    %v1709 = vunpack.c.l.b16 %v1638
    %v1710 = vunpack.c.l.b16 %v1639
    %v1711 = vunpack.c.l.b16 %v1640
    %v1712 = vunpack.c.l.b16 %v1641
    %v1713 = vunpack.c.l.b16 %v1642
    %v1714 = vunpack.c.l.b16 %v1643
    %v1715 = vunpack.c.l.b16 %v1644
    %v1716 = vunpack.c.l.b16 %v1645
    %v1717 = vunpack.c.l.b16 %v1646
    %v1718 = vunpack.c.l.b16 %v1647
    %v1719 = vunpack.c.l.b16 %v1648
    %v1720 = vunpack.c.l.b16 %v1649
    %v1721 = vunpack.c.l.b16 %v1650
    %v1722 = vunpack.c.l.b16 %v1651
    %v1723 = vunpack.c.l.b16 %v1652
    %v1724 = vunpack.c.l.b16 %v1653
    %v1725 = vunpack.c.l.b16 %v1654
    %v1726 = vunpack.c.l.b16 %v1655
    %v1727 = vunpack.c.l.b16 %v1656
    %v1728 = vunpack.c.l.b16 %v1657
    %v1729 = vunpack.c.l.b16 %v1658
    %v1730 = vunpack.c.l.b16 %v1659
    %v1731 = vunpack.c.l.b16 %v1660
    %v1732 = vunpack.c.l.b16 %v1661
    %v1733 = vunpack.c.l.b16 %v1662
    %v1734 = vunpack.c.l.b16 %v1663
    %v1735 = vunpack.c.l.b16 %v1664
    %v1736 = vpack.c.b16 %v1705, %v1704
    %v1737 = vpack.c.b16 %v1707, %v1706
    %v1738 = vpack.c.b16 %v1709, %v1708
    %v1739 = vpack.c.b16 %v1711, %v1710
    %v1740 = vpack.c.b16 %v1713, %v1712
    %v1741 = vpack.c.b16 %v1715, %v1714
    %v1742 = vpack.c.b16 %v1717, %v1716
    %v1743 = vpack.c.b16 %v1719, %v1718
    %v1744 = vpack.c.b16 %v1721, %v1720
    %v1745 = vpack.c.b16 %v1723, %v1722
    %v1746 = vpack.c.b16 %v1725, %v1724
    %v1747 = vpack.c.b16 %v1727, %v1726
    %v1748 = vpack.c.b16 %v1729, %v1728
    %v1749 = vpack.c.b16 %v1731, %v1730
    %v1750 = vpack.c.b16 %v1733, %v1732
    %v1751 = vpack.c.b16 %v1735, %v1734
    %1768 = vmatprep.subr.bf16.mxu0 0
    %1769 = vmatpush1.bf16.msra.mxu0 %v1736
    %1770 = vmatprep.subr.bf16.mxu0 0
    %1771 = vmatpush1.bf16.msra.mxu0 %v1737
    %1772 = vmatprep.subr.bf16.mxu0 0
    %1773 = vmatpush1.bf16.msra.mxu0 %v1738
    %1774 = vmatprep.subr.bf16.mxu0 0
    %1775 = vmatpush1.bf16.msra.mxu0 %v1739
    %1776 = vmatprep.subr.bf16.mxu0 0
    %1777 = vmatpush1.bf16.msra.mxu0 %v1740
    %1778 = vmatprep.subr.bf16.mxu0 0
    %1779 = vmatpush1.bf16.msra.mxu0 %v1741
    %1780 = vmatprep.subr.bf16.mxu0 0
    %1781 = vmatpush1.bf16.msra.mxu0 %v1742
    %1782 = vmatprep.subr.bf16.mxu0 0
    %1783 = vmatpush1.bf16.msra.mxu0 %v1743
    %1784 = vmatprep.subr.bf16.mxu0 0
    %1785 = vmatpush1.bf16.msra.mxu0 %v1744
    %1786 = vmatprep.subr.bf16.mxu0 0
    %1787 = vmatpush1.bf16.msra.mxu0 %v1745
    %1788 = vmatprep.subr.bf16.mxu0 0
    %1789 = vmatpush1.bf16.msra.mxu0 %v1746
    %1790 = vmatprep.subr.bf16.mxu0 0
    %1791 = vmatpush1.bf16.msra.mxu0 %v1747
    %1792 = vmatprep.subr.bf16.mxu0 0
    %1793 = vmatpush1.bf16.msra.mxu0 %v1748
    %1794 = vmatprep.subr.bf16.mxu0 0
    %1795 = vmatpush1.bf16.msra.mxu0 %v1749
    %1796 = vmatprep.subr.bf16.mxu0 0
    %1797 = vmatpush1.bf16.msra.mxu0 %v1750
    %1798 = vmatprep.subr.bf16.mxu0 0
    %1799 = vmatpush1.bf16.msra.mxu0 %v1751
    %1800 = vmatprep.mubr.bf16.mxu0 %v1632
    %1801 = vmatmul.mubr.bf16.gmra.mrb[0].mxu0 %v1631
    %v1802 = vpop.f32.mrb[0].mxu0
    %v1803 = vadd.f32 %v1670, %v1802
    %v1804 = vpop.f32.mrb[0].mxu0
    %v1805 = vpop.f32.mrb[0].mxu0
    %v1806 = vadd.f32 %v1670, %v1805
    %v1807 = vpop.f32.mrb[0].mxu0
    %1808 = vdwg.mxu0
    %v1809 = vxor.u32 %v1803, 2147483648
    %v1810 = vxor.u32 %v1806, 2147483648
    %v1811 = vmul.f32 %v1809, 1.442695
    %v1812 = vpow.pop %v1811
    %v1813 = vmul.f32 %v1810, 1.442695
    %v1814 = vpow.pop %v1813
    %v1815 = vadd.f32 %v1812, 1.0
    %v1816 = vadd.f32 %v1814, 1.0
    %v1817 = vrcp.pop %v1815
    %v1818 = vmul.f32 1.0, %v1817
    %v1819 = vrcp.pop %v1816
    %v1820 = vmul.f32 1.0, %v1819
    %1821 = vst [vmem:[#allocation10] sm:$0xff] %v1818
    %1822 = vst [vmem:[#allocation10 + $0x8] sm:$0xff] %v1820
    // Predicated region
    $region46: #{tpu_custom_call.1} parent=1 // pred_check
      _
    $region47: #{tpu_custom_call.1} parent=1 // pred_check_branch
      %1824 = sbr.rel (0) target = $region49
    $region48: #{tpu_custom_call.1} parent=1 // pred_region
      %s1826 = ssub.s32 256, 256
      %1827 = vsyncadd [#allocation4], %s1826
      %s1828 = sshll.u32 [#allocation10], 4
      %s1829 = int_to_ptr.vmem [resolvable:$true] %s1828
      %1834 = dma.vmem_to_hbm [thread:$0]  %s1829, 256, %s7, [#allocation4], 128, 128, 8
    $region49: #{tpu_custom_call.1} parent=1 // pred_fallthru
      _
    // Predicated region
    $region50: #{tpu_custom_call.1} parent=1 // pred_check
      _
    $region51: #{tpu_custom_call.1} parent=1 // pred_check_branch
      %1836 = sbr.rel (0) target = $region53
    $region52: #{tpu_custom_call.1} parent=1 // pred_region
      %1837 = dma.done [#allocation4], 256
    $region53: #{tpu_custom_call.1} parent=1 // pred_fallthru
      _
    %1838 = vsyncpa [#allocation3], 1
    %1839 = vsyncpa [#allocation6], 1
    %1840 = vsyncpa [#allocation9], 1
    %1841 = vsyncpa [#allocation4], 1

</llo_original>
